<compile_context>
chip_gen: v7x
topology: tpu7x:2x2x1
jax: 0.10.0
libtpu: 0.0.40
codegen_flags: <defaults>
</compile_context>

<pallas_src>
import jax
import jax.numpy as jnp
from jax.experimental import pallas as pl
from jax.experimental.pallas import tpu as pltpu


# ----------------------------------------------------------------------------
# Linear (fc1 / fc2): tiled matmul + bias on the MXU.
# ----------------------------------------------------------------------------
def _linear_kernel(x_ref, w_ref, b_ref, o_ref):
    acc = jnp.dot(x_ref[...], w_ref[...], preferred_element_type=jnp.float32)
    acc = acc + b_ref[0].astype(jnp.float32)
    o_ref[...] = acc.astype(o_ref.dtype)


def linear_forward(x2d, w, b, *, max_tm=128):
    """x2d: (M, K), w: (K, N), b: (N,) -> x2d @ w + b, shape (M, N)."""
    M, K = x2d.shape
    K2, N = w.shape
    assert K == K2
    tm = next(d for d in range(min(max_tm, M), 0, -1) if M % d == 0)
    assert tm % 8 == 0 or tm == M, "M tile must be sublane aligned"
    return pl.pallas_call(
        _linear_kernel,
        out_shape=jax.ShapeDtypeStruct((M, N), x2d.dtype),
        grid_spec=pltpu.PrefetchScalarGridSpec(
            num_scalar_prefetch=0,
            grid=(M // tm,),
            in_specs=[
                pl.BlockSpec((tm, K), lambda i: (i, 0)),
                pl.BlockSpec((K, N), lambda i: (0, 0)),
                pl.BlockSpec((1, N), lambda i: (0, 0)),
            ],
            out_specs=pl.BlockSpec((tm, N), lambda i: (i, 0)),
        ),
        compiler_params=pltpu.CompilerParams(
            dimension_semantics=("parallel",),
            vmem_limit_bytes=32 * 1024 * 1024,
        ),
    )(x2d, w, b.reshape(1, N))


# ----------------------------------------------------------------------------
# DWConv: depthwise 3x3, stride 1, pad 1, + bias. NHWC, row-strip tiled.
# ----------------------------------------------------------------------------
def _make_dwconv_kernel(TH, W, C):
    f32 = jnp.float32

    def kernel(xc_ref, xt_ref, xb_ref, w_ref, b_ref, o_ref, xs_ref):
        # xc_ref: (1, TH, W, C) current row strip
        # xt_ref: (1, 1, W, C)  row above the strip (index clamped at the border)
        # xb_ref: (1, 1, W, C)  row below the strip (index clamped at the border)
        # w_ref : (3, 3, C) depthwise taps; b_ref: (1, C) bias
        # o_ref : (1, TH, W, C)
        # xs_ref: (TH+2, W+2, C) f32 VMEM scratch — zero-padded strip (in-kernel halo)
        i = pl.program_id(1)
        last = pl.num_programs(1) - 1

        # Assemble the zero-padded strip in VMEM (no host-side pad pass).
        zero_col = jnp.zeros((TH + 2, 1, C), f32)
        xs_ref[:, 0:1, :] = zero_col
        xs_ref[:, W + 1:W + 2, :] = zero_col
        # Single upcast to f32 here (not once per tap).
        xs_ref[1:TH + 1, 1:W + 1, :] = xc_ref[0].astype(f32)

        @pl.when(i == 0)
        def _():  # top image border -> zero halo row
            xs_ref[0:1, 1:W + 1, :] = jnp.zeros((1, W, C), f32)

        @pl.when(i != 0)
        def _():
            xs_ref[0:1, 1:W + 1, :] = xt_ref[0].astype(f32)

        @pl.when(i == last)
        def _():  # bottom image border -> zero halo row
            xs_ref[TH + 1:TH + 2, 1:W + 1, :] = jnp.zeros((1, W, C), f32)

        @pl.when(i != last)
        def _():
            xs_ref[TH + 1:TH + 2, 1:W + 1, :] = xb_ref[0].astype(f32)

        # 9-tap depthwise MAC on the VPU; accumulator starts at the bias.
        acc = jnp.broadcast_to(b_ref[0].astype(f32), (TH, W, C))
        for dh in range(3):
            for dw in range(3):
                # TODO(synk): derive the dw=0/2 taps from one per-dh load with
                # pltpu.roll (XLU) to avoid the misaligned sublane slices.
                acc = acc + xs_ref[dh:dh + TH, dw:dw + W, :] * w_ref[dh, dw, :].astype(f32)
        o_ref[0] = acc.astype(o_ref.dtype)

    return kernel


def dwconv_forward(x_img, weight_hwc, bias, *, max_rows=8):
    """Depthwise 3x3 conv (stride 1, pad 1) + bias. x_img: (B,H,W,C) NHWC."""
    B, H, W, C = x_img.shape
    TH = next(d for d in range(min(max_rows, H), 0, -1) if H % d == 0)
    n_strips = H // TH

    def center_map(b, i):
        return (b, i, 0, 0)

    def top_map(b, i):  # element row i*TH - 1, clamped (zeroed in-kernel at border)
        return (b, jnp.maximum(i * TH - 1, 0), 0, 0)

    def bot_map(b, i):  # element row (i+1)*TH, clamped (zeroed in-kernel at border)
        return (b, jnp.minimum((i + 1) * TH, H - 1), 0, 0)

    return pl.pallas_call(
        _make_dwconv_kernel(TH, W, C),
        out_shape=jax.ShapeDtypeStruct((B, H, W, C), x_img.dtype),
        grid_spec=pltpu.PrefetchScalarGridSpec(
            num_scalar_prefetch=0,
            grid=(B, n_strips),
            in_specs=[
                pl.BlockSpec((1, TH, W, C), center_map),
                pl.BlockSpec((1, 1, W, C), top_map),
                pl.BlockSpec((1, 1, W, C), bot_map),
                pl.BlockSpec((3, 3, C), lambda b, i: (0, 0, 0)),
                pl.BlockSpec((1, C), lambda b, i: (0, 0)),
            ],
            out_specs=pl.BlockSpec((1, TH, W, C), center_map),
            scratch_shapes=[pltpu.VMEM((TH + 2, W + 2, C), jnp.float32)],
        ),
        compiler_params=pltpu.CompilerParams(
            dimension_semantics=("parallel", "parallel"),
            vmem_limit_bytes=32 * 1024 * 1024,
        ),
    )(x_img, x_img, x_img, weight_hwc, bias.reshape(1, C))


# ----------------------------------------------------------------------------
# Glue: axial channel-group shift (torch pad -> chunk -> roll -> narrow).
# ----------------------------------------------------------------------------
def _axial_shift(x_img, shift_size, axis):
    """Shift channel group g by shift_g in {-pad..pad} along `axis`, zero fill."""
    B, H, W, C = x_img.shape
    pad = shift_size // 2
    chunk = -(-C // shift_size)          # torch.chunk block size (ceil)
    shifts = list(range(-pad, pad + 1))
    L = x_img.shape[axis]
    idx = jnp.arange(L)
    mshape = [1, 1, 1, 1]
    mshape[axis] = L
    pieces = []
    for g0 in range(0, C, chunk):
        s = shifts[g0 // chunk]
        piece = x_img[..., g0:g0 + chunk]
        if s != 0:
            rolled = jnp.roll(piece, s, axis=axis)
            mask = ((idx - s >= 0) & (idx - s < L)).reshape(mshape)
            piece = jnp.where(mask, rolled, 0.0)
        pieces.append(piece)
    return jnp.concatenate(pieces, axis=-1)


# ----------------------------------------------------------------------------
# shiftmlp forward (Pallas-backed).
# ----------------------------------------------------------------------------
def shiftmlp_forward(x, H, W, params, shift_size=5):
    """x: (B, N, C_in) with N == H*W. Matches shiftmlp.forward (drop=0)."""
    B, N, C = x.shape
    assert N == H * W
    w1, b1 = params["w1"], params["b1"]          # (C_in, hidden), (hidden,)
    w_dw, b_dw = params["w_dw"], params["b_dw"]  # (3, 3, hidden), (hidden,)
    w2, b2 = params["w2"], params["b2"]          # (hidden, C_out), (C_out,)
    hidden = w1.shape[1]

    x_img = x.reshape(B, H, W, C)
    # TODO(synk): fuse the axial channel-group shifts into the fc matmul kernels'
    # input pipeline instead of materializing them via XLA glue.
    x_sh = _axial_shift(x_img, shift_size, axis=1)               # shift along H
    h = linear_forward(x_sh.reshape(B * N, C), w1, b1)           # fc1 (Pallas)
    h = dwconv_forward(h.reshape(B, H, W, hidden), w_dw, b_dw)   # DWConv (Pallas)
    # TODO(synk): fuse exact GELU (erf) into the dwconv kernel epilogue.
    h = jax.nn.gelu(h, approximate=False)                        # nn.GELU (exact)
    # nn.Dropout(p=0.0) is the identity; omitted.
    h_sh = _axial_shift(h, shift_size, axis=2)                   # shift along W
    out = linear_forward(h_sh.reshape(B * N, hidden), w2, b2)    # fc2 (Pallas)
    return out.reshape(B, N, -1)


# ----------------------------------------------------------------------------
# Pure-JAX reference mirroring the PyTorch forward exactly.
# ----------------------------------------------------------------------------
def _shiftmlp_reference(x, H, W, params, shift_size=5):
    B, N, C = x.shape
    pad = shift_size // 2
    hp = jax.lax.Precision.HIGHEST

    def torch_shift(img, axis):
        Bh, Hh, Wh, Cc = img.shape
        xpad = jnp.pad(img, ((0, 0), (pad, pad), (pad, pad), (0, 0)))
        chunk = -(-Cc // shift_size)
        outs = [jnp.roll(xpad[..., g:g + chunk], s, axis=axis)
                for g, s in zip(range(0, Cc, chunk), range(-pad, pad + 1))]
        xcat = jnp.concatenate(outs, axis=-1)
        return xcat[:, pad:pad + Hh, pad:pad + Wh, :]

    x_img = x.reshape(B, H, W, C)
    xs1 = torch_shift(x_img, axis=1).reshape(B * N, C)
    h = jnp.dot(xs1, params["w1"], precision=hp) + params["b1"]
    hidden = params["w1"].shape[1]
    k = params["w_dw"].reshape(3, 3, 1, hidden)
    h_dw = jax.lax.conv_general_dilated(
        h.reshape(B, H, W, hidden), k,
        window_strides=(1, 1), padding=((1, 1), (1, 1)),
        dimension_numbers=("NHWC", "HWIO", "NHWC"),
        feature_group_count=hidden, precision=hp)
    h_dw = h_dw + params["b_dw"]
    h_act = jax.nn.gelu(h_dw, approximate=False)
    hs2 = torch_shift(h_act, axis=2).reshape(B * N, hidden)
    out = jnp.dot(hs2, params["w2"], precision=hp) + params["b2"]
    return out.reshape(B, N, -1)


if __name__ == "__main__":
    # Small test shapes. The torch module requires hidden == in_features for the
    # second shift's view to be valid, so dim = in = hidden = out = 32.
    B, DIM, H, W = 2, 32, 16, 16
    N = H * W

    key = jax.random.PRNGKey(0)
    kx, k1, k2, k3, k4, k5, k6 = jax.random.split(key, 7)
    x = jax.random.normal(kx, (B, N, DIM), dtype=jnp.float32)
    params = {
        "w1": jax.random.normal(k1, (DIM, DIM), jnp.float32) * 0.1,
        "b1": jax.random.normal(k2, (DIM,), jnp.float32) * 0.1,
        # torch dwconv weight is (dim,1,3,3); stored here as (3,3,dim):
        # w_dw[kh,kw,c] == torch_weight[c,0,kh,kw].
        "w_dw": jax.random.normal(k3, (3, 3, DIM), jnp.float32) * 0.3,
        "b_dw": jax.random.normal(k4, (DIM,), jnp.float32) * 0.1,
        "w2": jax.random.normal(k5, (DIM, DIM), jnp.float32) * 0.1,
        "b2": jax.random.normal(k6, (DIM,), jnp.float32) * 0.1,
    }

    out = jax.jit(shiftmlp_forward, static_argnums=(1, 2))(x, H, W, params)
    out = jax.block_until_ready(out)

    ref = _shiftmlp_reference(x, H, W, params)
    assert out.shape == (B, N, DIM)
    max_err = float(jnp.max(jnp.abs(out - ref)))
    assert jnp.allclose(out, ref, atol=1e-4, rtol=1e-4), max_err

    print("KERNEL_OK")
</pallas_src>

<mosaic_0001>
module attributes {stable_mosaic.version = 11 : i64} {
  func.func @_linear_kernel(%arg0: i32, %arg1: memref<128x32xf32, #tpu.memory_space<vmem>>, %arg2: memref<32x32xf32, #tpu.memory_space<vmem>>, %arg3: memref<1x32xf32, #tpu.memory_space<vmem>>, %arg4: memref<128x32xf32, #tpu.memory_space<vmem>>) attributes {dimension_semantics = [#tpu.dimension_semantics<parallel>], iteration_bounds = array<i64: 4>, scalar_prefetch = 0 : i64, scratch_operands = 0 : i64, tpu.core_type = #tpu.core_type<tc>, window_params = [{transform_indices = @transform_0, window_bounds = array<i64: 128, 32>}, {pipeline_mode = #tpu.pipeline_mode<synchronous>, transform_indices = @transform_1, window_bounds = array<i64: 32, 32>}, {pipeline_mode = #tpu.pipeline_mode<synchronous>, transform_indices = @transform_2, window_bounds = array<i64: 1, 32>}, {transform_indices = @transform_3, window_bounds = array<i64: 128, 32>}]} {
    %c0 = arith.constant 0 : index
    %c0_0 = arith.constant 0 : index
    %0 = vector.load %arg1[%c0, %c0_0] : memref<128x32xf32, #tpu.memory_space<vmem>>, vector<128x32xf32>
    %c0_1 = arith.constant 0 : index
    %c0_2 = arith.constant 0 : index
    %1 = vector.load %arg2[%c0_1, %c0_2] : memref<32x32xf32, #tpu.memory_space<vmem>>, vector<32x32xf32>
    %cst = arith.constant dense<0.000000e+00> : vector<128x32xf32>
    %2 = tpu.matmul %0, %1, %cst {dimension_numbers = #tpu.dot_dimension_numbers<[1], [0], [0], [1], [0, 0, 1, 1], [], []>} : vector<128x32xf32>, vector<32x32xf32>, vector<128x32xf32> -> vector<128x32xf32>
    %c0_3 = arith.constant 0 : index
    %c0_4 = arith.constant 0 : index
    %3 = vector.load %arg3[%c0_3, %c0_4] : memref<1x32xf32, #tpu.memory_space<vmem>>, vector<1x32xf32>
    %4 = vector.shape_cast %3 : vector<1x32xf32> to vector<32xf32>
    %5 = vector.shape_cast %4 : vector<32xf32> to vector<1x32xf32>
    %6 = vector.broadcast %5 : vector<1x32xf32> to vector<128x32xf32>
    %7 = arith.addf %2, %6 : vector<128x32xf32>
    %c0_5 = arith.constant 0 : index
    %c0_6 = arith.constant 0 : index
    %8 = vector.load %arg4[%c0_5, %c0_6] : memref<128x32xf32, #tpu.memory_space<vmem>>, vector<128x32xf32>
    tpu.vector_store %arg4[%c0_5, %c0_6], %7 {strides = array<i32>} : memref<128x32xf32, #tpu.memory_space<vmem>>, vector<128x32xf32>,
    return
  }
  func.func @transform_0(%arg0: i32) -> (i32, i32) {
    %c0_i32 = arith.constant 0 : i32
    %c0_i32_0 = arith.constant 0 : i32
    return %arg0, %c0_i32 : i32, i32
  }
  func.func @transform_1(%arg0: i32) -> (i32, i32) {
    %c0_i32 = arith.constant 0 : i32
    %c0_i32_0 = arith.constant 0 : i32
    %c0_i32_1 = arith.constant 0 : i32
    return %c0_i32, %c0_i32_0 : i32, i32
  }
  func.func @transform_2(%arg0: i32) -> (i32, i32) {
    %c0_i32 = arith.constant 0 : i32
    %c0_i32_0 = arith.constant 0 : i32
    %c0_i32_1 = arith.constant 0 : i32
    return %c0_i32, %c0_i32_0 : i32, i32
  }
  func.func @transform_3(%arg0: i32) -> (i32, i32) {
    %c0_i32 = arith.constant 0 : i32
    %c0_i32_0 = arith.constant 0 : i32
    return %arg0, %c0_i32 : i32, i32
  }
}

module attributes {stable_mosaic.version = 11 : i64} {
  func.func @kernel(%arg0: i32, %arg1: i32, %arg2: memref<1x8x16x32xf32, #tpu.memory_space<vmem>>, %arg3: memref<1x1x16x32xf32, #tpu.memory_space<vmem>>, %arg4: memref<1x1x16x32xf32, #tpu.memory_space<vmem>>, %arg5: memref<3x3x32xf32, #tpu.memory_space<vmem>>, %arg6: memref<1x32xf32, #tpu.memory_space<vmem>>, %arg7: memref<1x8x16x32xf32, #tpu.memory_space<vmem>>, %arg8: memref<10x18x32xf32, #tpu.memory_space<vmem>>) attributes {dimension_semantics = [#tpu.dimension_semantics<parallel>, #tpu.dimension_semantics<parallel>], iteration_bounds = array<i64: 2, 2>, scalar_prefetch = 0 : i64, scratch_operands = 1 : i64, tpu.core_type = #tpu.core_type<tc>, window_params = [{transform_indices = @transform_0, window_bounds = array<i64: 1, 8, 16, 32>}, {transform_indices = @transform_1, window_bounds = array<i64: 1, 1, 16, 32>}, {transform_indices = @transform_2, window_bounds = array<i64: 1, 1, 16, 32>}, {pipeline_mode = #tpu.pipeline_mode<synchronous>, transform_indices = @transform_3, window_bounds = array<i64: 3, 3, 32>}, {pipeline_mode = #tpu.pipeline_mode<synchronous>, transform_indices = @transform_4, window_bounds = array<i64: 1, 32>}, {transform_indices = @transform_5, window_bounds = array<i64: 1, 8, 16, 32>}]} {
    %cst = arith.constant 0.000000e+00 : f32
    %0 = vector.broadcast %cst : f32 to vector<10x1x32xf32>
    %c0 = arith.constant 0 : index
    %c0_0 = arith.constant 0 : index
    %c0_1 = arith.constant 0 : index
    %1 = vector.load %arg8[%c0, %c0_0, %c0_1] : memref<10x18x32xf32, #tpu.memory_space<vmem>>, vector<10x1x32xf32>
    tpu.vector_store %arg8[%c0, %c0_0, %c0_1], %0 {strides = array<i32>} : memref<10x18x32xf32, #tpu.memory_space<vmem>>, vector<10x1x32xf32>,
    %c0_2 = arith.constant 0 : index
    %c17 = arith.constant 17 : index
    %c0_3 = arith.constant 0 : index
    %2 = vector.load %arg8[%c0_2, %c17, %c0_3] : memref<10x18x32xf32, #tpu.memory_space<vmem>>, vector<10x1x32xf32>
    tpu.vector_store %arg8[%c0_2, %c17, %c0_3], %0 {strides = array<i32>} : memref<10x18x32xf32, #tpu.memory_space<vmem>>, vector<10x1x32xf32>,
    %c0_4 = arith.constant 0 : index
    %c0_5 = arith.constant 0 : index
    %c0_6 = arith.constant 0 : index
    %c0_7 = arith.constant 0 : index
    %3 = vector.load %arg2[%c0_4, %c0_5, %c0_6, %c0_7] : memref<1x8x16x32xf32, #tpu.memory_space<vmem>>, vector<1x8x16x32xf32>
    %4 = vector.shape_cast %3 : vector<1x8x16x32xf32> to vector<8x16x32xf32>
    %c1 = arith.constant 1 : index
    %c1_8 = arith.constant 1 : index
    %c0_9 = arith.constant 0 : index
    %5 = vector.load %arg8[%c1, %c1_8, %c0_9] : memref<10x18x32xf32, #tpu.memory_space<vmem>>, vector<8x16x32xf32>
    tpu.vector_store %arg8[%c1, %c1_8, %c0_9], %4 {strides = array<i32>} : memref<10x18x32xf32, #tpu.memory_space<vmem>>, vector<8x16x32xf32>,
    %c0_i32 = arith.constant 0 : i32
    %6 = arith.cmpi eq, %arg1, %c0_i32 : i32
    %7 = arith.extui %6 : i1 to i32
    %c0_i32_10 = arith.constant 0 : i32
    %8 = arith.cmpi ne, %7, %c0_i32_10 : i32
    scf.if %8 {
      %cst_75 = arith.constant 0.000000e+00 : f32
      %88 = vector.broadcast %cst_75 : f32 to vector<1x16x32xf32>
      %c0_76 = arith.constant 0 : index
      %c1_77 = arith.constant 1 : index
      %c0_78 = arith.constant 0 : index
      %89 = vector.load %arg8[%c0_76, %c1_77, %c0_78] : memref<10x18x32xf32, #tpu.memory_space<vmem>>, vector<1x16x32xf32>
      tpu.vector_store %arg8[%c0_76, %c1_77, %c0_78], %88 {strides = array<i32>} : memref<10x18x32xf32, #tpu.memory_space<vmem>>, vector<1x16x32xf32>,
    } else {
    }
    %c0_i32_11 = arith.constant 0 : i32
    %9 = arith.cmpi ne, %arg1, %c0_i32_11 : i32
    %10 = arith.extui %9 : i1 to i32
    %c0_i32_12 = arith.constant 0 : i32
    %11 = arith.cmpi ne, %10, %c0_i32_12 : i32
    scf.if %11 {
      %c0_75 = arith.constant 0 : index
      %c0_76 = arith.constant 0 : index
      %c0_77 = arith.constant 0 : index
      %c0_78 = arith.constant 0 : index
      %88 = vector.load %arg3[%c0_75, %c0_76, %c0_77, %c0_78] : memref<1x1x16x32xf32, #tpu.memory_space<vmem>>, vector<1x1x16x32xf32>
      %89 = vector.shape_cast %88 : vector<1x1x16x32xf32> to vector<1x16x32xf32>
      %c0_79 = arith.constant 0 : index
      %c1_80 = arith.constant 1 : index
      %c0_81 = arith.constant 0 : index
      %90 = vector.load %arg8[%c0_79, %c1_80, %c0_81] : memref<10x18x32xf32, #tpu.memory_space<vmem>>, vector<1x16x32xf32>
      tpu.vector_store %arg8[%c0_79, %c1_80, %c0_81], %89 {strides = array<i32>} : memref<10x18x32xf32, #tpu.memory_space<vmem>>, vector<1x16x32xf32>,
    } else {
    }
    %c1_i32 = arith.constant 1 : i32
    %12 = arith.cmpi eq, %arg1, %c1_i32 : i32
    %13 = arith.extui %12 : i1 to i32
    %c0_i32_13 = arith.constant 0 : i32
    %14 = arith.cmpi ne, %13, %c0_i32_13 : i32
    scf.if %14 {
      %cst_75 = arith.constant 0.000000e+00 : f32
      %88 = vector.broadcast %cst_75 : f32 to vector<1x16x32xf32>
      %c9 = arith.constant 9 : index
      %c1_76 = arith.constant 1 : index
      %c0_77 = arith.constant 0 : index
      %89 = vector.load %arg8[%c9, %c1_76, %c0_77] : memref<10x18x32xf32, #tpu.memory_space<vmem>>, vector<1x16x32xf32>
      tpu.vector_store %arg8[%c9, %c1_76, %c0_77], %88 {strides = array<i32>} : memref<10x18x32xf32, #tpu.memory_space<vmem>>, vector<1x16x32xf32>,
    } else {
    }
    %c1_i32_14 = arith.constant 1 : i32
    %15 = arith.cmpi ne, %arg1, %c1_i32_14 : i32
    %16 = arith.extui %15 : i1 to i32
    %c0_i32_15 = arith.constant 0 : i32
    %17 = arith.cmpi ne, %16, %c0_i32_15 : i32
    scf.if %17 {
      %c0_75 = arith.constant 0 : index
      %c0_76 = arith.constant 0 : index
      %c0_77 = arith.constant 0 : index
      %c0_78 = arith.constant 0 : index
      %88 = vector.load %arg4[%c0_75, %c0_76, %c0_77, %c0_78] : memref<1x1x16x32xf32, #tpu.memory_space<vmem>>, vector<1x1x16x32xf32>
      %89 = vector.shape_cast %88 : vector<1x1x16x32xf32> to vector<1x16x32xf32>
      %c9 = arith.constant 9 : index
      %c1_79 = arith.constant 1 : index
      %c0_80 = arith.constant 0 : index
      %90 = vector.load %arg8[%c9, %c1_79, %c0_80] : memref<10x18x32xf32, #tpu.memory_space<vmem>>, vector<1x16x32xf32>
      tpu.vector_store %arg8[%c9, %c1_79, %c0_80], %89 {strides = array<i32>} : memref<10x18x32xf32, #tpu.memory_space<vmem>>, vector<1x16x32xf32>,
    } else {
    }
    %c0_16 = arith.constant 0 : index
    %c0_17 = arith.constant 0 : index
    %18 = vector.load %arg6[%c0_16, %c0_17] : memref<1x32xf32, #tpu.memory_space<vmem>>, vector<1x32xf32>
    %19 = vector.shape_cast %18 : vector<1x32xf32> to vector<32xf32>
    %20 = vector.shape_cast %19 : vector<32xf32> to vector<1x1x32xf32>
    %21 = vector.broadcast %20 : vector<1x1x32xf32> to vector<8x16x32xf32>
    %c0_18 = arith.constant 0 : index
    %c0_19 = arith.constant 0 : index
    %c0_20 = arith.constant 0 : index
    %22 = vector.load %arg8[%c0_18, %c0_19, %c0_20] : memref<10x18x32xf32, #tpu.memory_space<vmem>>, vector<8x16x32xf32>
    %c0_21 = arith.constant 0 : index
    %c0_22 = arith.constant 0 : index
    %c0_23 = arith.constant 0 : index
    %23 = vector.load %arg5[%c0_21, %c0_22, %c0_23] : memref<3x3x32xf32, #tpu.memory_space<vmem>>, vector<1x1x32xf32>
    %24 = vector.shape_cast %23 : vector<1x1x32xf32> to vector<32xf32>
    %25 = vector.shape_cast %24 : vector<32xf32> to vector<1x1x32xf32>
    %26 = vector.broadcast %25 : vector<1x1x32xf32> to vector<8x16x32xf32>
    %27 = arith.mulf %22, %26 : vector<8x16x32xf32>
    %28 = arith.addf %21, %27 : vector<8x16x32xf32>
    %c0_24 = arith.constant 0 : index
    %c1_25 = arith.constant 1 : index
    %c0_26 = arith.constant 0 : index
    %29 = vector.load %arg8[%c0_24, %c1_25, %c0_26] : memref<10x18x32xf32, #tpu.memory_space<vmem>>, vector<8x16x32xf32>
    %c0_27 = arith.constant 0 : index
    %c1_28 = arith.constant 1 : index
    %c0_29 = arith.constant 0 : index
    %30 = vector.load %arg5[%c0_27, %c1_28, %c0_29] : memref<3x3x32xf32, #tpu.memory_space<vmem>>, vector<1x1x32xf32>
    %31 = vector.shape_cast %30 : vector<1x1x32xf32> to vector<32xf32>
    %32 = vector.shape_cast %31 : vector<32xf32> to vector<1x1x32xf32>
    %33 = vector.broadcast %32 : vector<1x1x32xf32> to vector<8x16x32xf32>
    %34 = arith.mulf %29, %33 : vector<8x16x32xf32>
    %35 = arith.addf %28, %34 : vector<8x16x32xf32>
    %c0_30 = arith.constant 0 : index
    %c2 = arith.constant 2 : index
    %c0_31 = arith.constant 0 : index
    %36 = vector.load %arg8[%c0_30, %c2, %c0_31] : memref<10x18x32xf32, #tpu.memory_space<vmem>>, vector<8x16x32xf32>
    %c0_32 = arith.constant 0 : index
    %c2_33 = arith.constant 2 : index
    %c0_34 = arith.constant 0 : index
    %37 = vector.load %arg5[%c0_32, %c2_33, %c0_34] : memref<3x3x32xf32, #tpu.memory_space<vmem>>, vector<1x1x32xf32>
    %38 = vector.shape_cast %37 : vector<1x1x32xf32> to vector<32xf32>
    %39 = vector.shape_cast %38 : vector<32xf32> to vector<1x1x32xf32>
    %40 = vector.broadcast %39 : vector<1x1x32xf32> to vector<8x16x32xf32>
    %41 = arith.mulf %36, %40 : vector<8x16x32xf32>
    %42 = arith.addf %35, %41 : vector<8x16x32xf32>
    %c1_35 = arith.constant 1 : index
    %c0_36 = arith.constant 0 : index
    %c0_37 = arith.constant 0 : index
    %43 = vector.load %arg8[%c1_35, %c0_36, %c0_37] : memref<10x18x32xf32, #tpu.memory_space<vmem>>, vector<8x16x32xf32>
    %c1_38 = arith.constant 1 : index
    %c0_39 = arith.constant 0 : index
    %c0_40 = arith.constant 0 : index
    %44 = vector.load %arg5[%c1_38, %c0_39, %c0_40] : memref<3x3x32xf32, #tpu.memory_space<vmem>>, vector<1x1x32xf32>
    %45 = vector.shape_cast %44 : vector<1x1x32xf32> to vector<32xf32>
    %46 = vector.shape_cast %45 : vector<32xf32> to vector<1x1x32xf32>
    %47 = vector.broadcast %46 : vector<1x1x32xf32> to vector<8x16x32xf32>
    %48 = arith.mulf %43, %47 : vector<8x16x32xf32>
    %49 = arith.addf %42, %48 : vector<8x16x32xf32>
    %c1_41 = arith.constant 1 : index
    %c1_42 = arith.constant 1 : index
    %c0_43 = arith.constant 0 : index
    %50 = vector.load %arg8[%c1_41, %c1_42, %c0_43] : memref<10x18x32xf32, #tpu.memory_space<vmem>>, vector<8x16x32xf32>
    %c1_44 = arith.constant 1 : index
    %c1_45 = arith.constant 1 : index
    %c0_46 = arith.constant 0 : index
    %51 = vector.load %arg5[%c1_44, %c1_45, %c0_46] : memref<3x3x32xf32, #tpu.memory_space<vmem>>, vector<1x1x32xf32>
    %52 = vector.shape_cast %51 : vector<1x1x32xf32> to vector<32xf32>
    %53 = vector.shape_cast %52 : vector<32xf32> to vector<1x1x32xf32>
    %54 = vector.broadcast %53 : vector<1x1x32xf32> to vector<8x16x32xf32>
    %55 = arith.mulf %50, %54 : vector<8x16x32xf32>
    %56 = arith.addf %49, %55 : vector<8x16x32xf32>
    %c1_47 = arith.constant 1 : index
    %c2_48 = arith.constant 2 : index
    %c0_49 = arith.constant 0 : index
    %57 = vector.load %arg8[%c1_47, %c2_48, %c0_49] : memref<10x18x32xf32, #tpu.memory_space<vmem>>, vector<8x16x32xf32>
    %c1_50 = arith.constant 1 : index
    %c2_51 = arith.constant 2 : index
    %c0_52 = arith.constant 0 : index
    %58 = vector.load %arg5[%c1_50, %c2_51, %c0_52] : memref<3x3x32xf32, #tpu.memory_space<vmem>>, vector<1x1x32xf32>
    %59 = vector.shape_cast %58 : vector<1x1x32xf32> to vector<32xf32>
    %60 = vector.shape_cast %59 : vector<32xf32> to vector<1x1x32xf32>
    %61 = vector.broadcast %60 : vector<1x1x32xf32> to vector<8x16x32xf32>
    %62 = arith.mulf %57, %61 : vector<8x16x32xf32>
    %63 = arith.addf %56, %62 : vector<8x16x32xf32>
    %c2_53 = arith.constant 2 : index
    %c0_54 = arith.constant 0 : index
    %c0_55 = arith.constant 0 : index
    %64 = vector.load %arg8[%c2_53, %c0_54, %c0_55] : memref<10x18x32xf32, #tpu.memory_space<vmem>>, vector<8x16x32xf32>
    %c2_56 = arith.constant 2 : index
    %c0_57 = arith.constant 0 : index
    %c0_58 = arith.constant 0 : index
    %65 = vector.load %arg5[%c2_56, %c0_57, %c0_58] : memref<3x3x32xf32, #tpu.memory_space<vmem>>, vector<1x1x32xf32>
    %66 = vector.shape_cast %65 : vector<1x1x32xf32> to vector<32xf32>
    %67 = vector.shape_cast %66 : vector<32xf32> to vector<1x1x32xf32>
    %68 = vector.broadcast %67 : vector<1x1x32xf32> to vector<8x16x32xf32>
    %69 = arith.mulf %64, %68 : vector<8x16x32xf32>
    %70 = arith.addf %63, %69 : vector<8x16x32xf32>
    %c2_59 = arith.constant 2 : index
    %c1_60 = arith.constant 1 : index
    %c0_61 = arith.constant 0 : index
    %71 = vector.load %arg8[%c2_59, %c1_60, %c0_61] : memref<10x18x32xf32, #tpu.memory_space<vmem>>, vector<8x16x32xf32>
    %c2_62 = arith.constant 2 : index
    %c1_63 = arith.constant 1 : index
    %c0_64 = arith.constant 0 : index
    %72 = vector.load %arg5[%c2_62, %c1_63, %c0_64] : memref<3x3x32xf32, #tpu.memory_space<vmem>>, vector<1x1x32xf32>
    %73 = vector.shape_cast %72 : vector<1x1x32xf32> to vector<32xf32>
    %74 = vector.shape_cast %73 : vector<32xf32> to vector<1x1x32xf32>
    %75 = vector.broadcast %74 : vector<1x1x32xf32> to vector<8x16x32xf32>
    %76 = arith.mulf %71, %75 : vector<8x16x32xf32>
    %77 = arith.addf %70, %76 : vector<8x16x32xf32>
    %c2_65 = arith.constant 2 : index
    %c2_66 = arith.constant 2 : index
    %c0_67 = arith.constant 0 : index
    %78 = vector.load %arg8[%c2_65, %c2_66, %c0_67] : memref<10x18x32xf32, #tpu.memory_space<vmem>>, vector<8x16x32xf32>
    %c2_68 = arith.constant 2 : index
    %c2_69 = arith.constant 2 : index
    %c0_70 = arith.constant 0 : index
    %79 = vector.load %arg5[%c2_68, %c2_69, %c0_70] : memref<3x3x32xf32, #tpu.memory_space<vmem>>, vector<1x1x32xf32>
    %80 = vector.shape_cast %79 : vector<1x1x32xf32> to vector<32xf32>
    %81 = vector.shape_cast %80 : vector<32xf32> to vector<1x1x32xf32>
    %82 = vector.broadcast %81 : vector<1x1x32xf32> to vector<8x16x32xf32>
    %83 = arith.mulf %78, %82 : vector<8x16x32xf32>
    %84 = arith.addf %77, %83 : vector<8x16x32xf32>
    %c0_71 = arith.constant 0 : index
    %c0_72 = arith.constant 0 : index
    %c0_73 = arith.constant 0 : index
    %c0_74 = arith.constant 0 : index
    %85 = vector.load %arg7[%c0_71, %c0_72, %c0_73, %c0_74] : memref<1x8x16x32xf32, #tpu.memory_space<vmem>>, vector<1x8x16x32xf32>
    %86 = vector.shape_cast %85 : vector<1x8x16x32xf32> to vector<8x16x32xf32>
    %87 = vector.shape_cast %84 : vector<8x16x32xf32> to vector<1x8x16x32xf32>
    tpu.vector_store %arg7[%c0_71, %c0_72, %c0_73, %c0_74], %87 {strides = array<i32>} : memref<1x8x16x32xf32, #tpu.memory_space<vmem>>, vector<1x8x16x32xf32>,
    return
  }
  func.func @transform_0(%arg0: i32, %arg1: i32) -> (i32, i32, i32, i32) {
    %c0_i32 = arith.constant 0 : i32
    %c0_i32_0 = arith.constant 0 : i32
    %c0_i32_1 = arith.constant 0 : i32
    return %arg0, %arg1, %c0_i32, %c0_i32_0 : i32, i32, i32, i32
  }
  func.func @transform_1(%arg0: i32, %arg1: i32) -> (i32, i32, i32, i32) {
    %c8_i32 = arith.constant 8 : i32
    %0 = arith.muli %arg1, %c8_i32 : i32
    %c1_i32 = arith.constant 1 : i32
    %1 = arith.subi %0, %c1_i32 : i32
    %c0_i32 = arith.constant 0 : i32
    %2 = arith.maxsi %1, %c0_i32 : i32
    %c0_i32_0 = arith.constant 0 : i32
    %c0_i32_1 = arith.constant 0 : i32
    %c0_i32_2 = arith.constant 0 : i32
    return %arg0, %2, %c0_i32_0, %c0_i32_1 : i32, i32, i32, i32
  }
  func.func @transform_2(%arg0: i32, %arg1: i32) -> (i32, i32, i32, i32) {
    %c1_i32 = arith.constant 1 : i32
    %0 = arith.addi %arg1, %c1_i32 : i32
    %c8_i32 = arith.constant 8 : i32
    %1 = arith.muli %0, %c8_i32 : i32
    %c15_i32 = arith.constant 15 : i32
    %2 = arith.minsi %1, %c15_i32 : i32
    %c0_i32 = arith.constant 0 : i32
    %c0_i32_0 = arith.constant 0 : i32
    %c0_i32_1 = arith.constant 0 : i32
    return %arg0, %2, %c0_i32, %c0_i32_0 : i32, i32, i32, i32
  }
  func.func @transform_3(%arg0: i32, %arg1: i32) -> (i32, i32, i32) {
    %c0_i32 = arith.constant 0 : i32
    %c0_i32_0 = arith.constant 0 : i32
    %c0_i32_1 = arith.constant 0 : i32
    %c0_i32_2 = arith.constant 0 : i32
    return %c0_i32, %c0_i32_0, %c0_i32_1 : i32, i32, i32
  }
  func.func @transform_4(%arg0: i32, %arg1: i32) -> (i32, i32) {
    %c0_i32 = arith.constant 0 : i32
    %c0_i32_0 = arith.constant 0 : i32
    %c0_i32_1 = arith.constant 0 : i32
    return %c0_i32, %c0_i32_0 : i32, i32
  }
  func.func @transform_5(%arg0: i32, %arg1: i32) -> (i32, i32, i32, i32) {
    %c0_i32 = arith.constant 0 : i32
    %c0_i32_0 = arith.constant 0 : i32
    %c0_i32_1 = arith.constant 0 : i32
    return %arg0, %arg1, %c0_i32, %c0_i32_0 : i32, i32, i32, i32
  }
}

</mosaic_0001>

<llo_original>
// kernel: shiftmlp_forward.3
$region0: #{shiftmlp_forward.3}
  #allocation0 [shape = 'u32[]', space=smem, size = 0x4, offset = 0x4, fixed_abs, tag = 'smem constant byte address 0x4 - core index']
  #allocation1 [shape = 'u32[144,128]{1,0:T(1,128)}', space=vmem, size = 0x12000, scoped, tag = 'internal scratch']
  %s0 = inlined_call_operand.vmem [shape: f32[512,32], index: 0, kind: input, shape index: {}]
  %s1 = inlined_call_operand.vmem [shape: f32[32,32], index: 1, kind: input, shape index: {}]
  %s2 = inlined_call_operand.vmem [shape: f32[1,32], index: 2, kind: input, shape index: {}]
  %s3 = inlined_call_operand.vmem [shape: f32[512,32], index: 3, kind: output, shape index: {}]
  %s4 = sld [smem:[#allocation0]]
  $region45: #{shiftmlp_forward.3} parent=0
    _
  %s6 = ssub.s32 1, %s4
  %s7 = scalar_select 0, %s6, %s4
  loop: start=0, step=1, limit=6
  $region2: #{shiftmlp_forward.3} parent=0 // loop_pre_header
    _
  $region3: #{shiftmlp_forward.3} parent=0 // loop_header
    %s9 = sphi 0, %s13
    %p10 = scmp.ge.s32.totalorder %s9, 6
    %s19 = sphi 0, %s21
    %s22 = sphi 0, %s19
    %s23 = sphi 0, %s22
    %s39 = sphi 0, %s23
    %s43 = sphi 0, %s43
    %s45 = sphi 0, %s43
    %s46 = sphi 0, %s45
    %s60 = sphi 0, %s46
    %s64 = sphi 0, %s64
    %s66 = sphi 0, %s64
    %s67 = sphi 0, %s66
    %s81 = sphi 0, %s67
    %s87 = sphi 0, %s89
    %s90 = sphi 0, %s87
    %s91 = sphi 0, %s90
    %s107 = sphi 0, %s91
  $region4: #{shiftmlp_forward.3} parent=0 // loop_header_branch
    %12 = sbr.rel (%p10) target = $region8
  $region5: #{shiftmlp_forward.3} parent=0 // loop_body
    %s14 = ssub.s32 %s9, 1
    %s15 = ssub.s32 %s9, 2
    %s16 = sadd.s32 %s9, 1
    %s17 = ssub.s32 %s9, %s16
    %p18 = scmp.eq.s32.totalorder %s17, 0
    %s20 = sadd.s32 %s19, 1
    %s21 = scalar_select %p18, %s19, %s20
    %p24 = pneg %p18
    %p25 = scmp.eq.s32.totalorder %s9, 3
    %p26 = por %p24, %p25
    %p27 = scmp.ne.s32.totalorder %s19, %s22
    %p28 = scmp.eq.s32.totalorder %s9, 0
    %p29 = por %p27, %p28
    %p30 = scmp.ne.s32.totalorder %s19, %s22
    %p31 = scmp.eq.s32.totalorder %s14, 3
    %p32 = por %p30, %p31
    %p33 = scmp.ne.s32.totalorder %s22, %s23
    %p34 = scmp.eq.s32.totalorder %s14, 0
    %p35 = por %p33, %p34
    %p36 = scmp.ne.s32.totalorder %s22, %s23
    %p37 = scmp.eq.s32.totalorder %s15, 3
    %p38 = por %p36, %p37
    %p40 = scmp.ne.s32.totalorder %s23, %s39
    %p41 = scmp.eq.s32.totalorder %s15, 0
    %p42 = por %p40, %p41
    %s44 = sadd.s32 %s43, 1
    %p47 = scmp.eq.s32.totalorder %s9, 3
    %p48 = scmp.ne.s32.totalorder %s43, %s45
    %p49 = scmp.eq.s32.totalorder %s9, 0
    %p50 = por %p48, %p49
    %p51 = scmp.ne.s32.totalorder %s43, %s45
    %p52 = scmp.eq.s32.totalorder %s14, 3
    %p53 = por %p51, %p52
    %p54 = scmp.ne.s32.totalorder %s45, %s46
    %p55 = scmp.eq.s32.totalorder %s14, 0
    %p56 = por %p54, %p55
    %p57 = scmp.ne.s32.totalorder %s45, %s46
    %p58 = scmp.eq.s32.totalorder %s15, 3
    %p59 = por %p57, %p58
    %p61 = scmp.ne.s32.totalorder %s46, %s60
    %p62 = scmp.eq.s32.totalorder %s15, 0
    %p63 = por %p61, %p62
    %s65 = sadd.s32 %s64, 1
    %p68 = scmp.eq.s32.totalorder %s9, 3
    %p69 = scmp.ne.s32.totalorder %s64, %s66
    %p70 = scmp.eq.s32.totalorder %s9, 0
    %p71 = por %p69, %p70
    %p72 = scmp.ne.s32.totalorder %s64, %s66
    %p73 = scmp.eq.s32.totalorder %s14, 3
    %p74 = por %p72, %p73
    %p75 = scmp.ne.s32.totalorder %s66, %s67
    %p76 = scmp.eq.s32.totalorder %s14, 0
    %p77 = por %p75, %p76
    %p78 = scmp.ne.s32.totalorder %s66, %s67
    %p79 = scmp.eq.s32.totalorder %s15, 3
    %p80 = por %p78, %p79
    %p82 = scmp.ne.s32.totalorder %s67, %s81
    %p83 = scmp.eq.s32.totalorder %s15, 0
    %p84 = por %p82, %p83
    %s85 = ssub.s32 %s9, %s16
    %p86 = scmp.eq.s32.totalorder %s85, 0
    %s88 = sadd.s32 %s87, 1
    %s89 = scalar_select %p86, %s87, %s88
    %p92 = pneg %p86
    %p93 = scmp.eq.s32.totalorder %s9, 3
    %p94 = por %p92, %p93
    %p95 = scmp.ne.s32.totalorder %s87, %s90
    %p96 = scmp.eq.s32.totalorder %s9, 0
    %p97 = por %p95, %p96
    %p98 = scmp.ne.s32.totalorder %s87, %s90
    %p99 = scmp.eq.s32.totalorder %s14, 3
    %p100 = por %p98, %p99
    %p101 = scmp.ne.s32.totalorder %s90, %s91
    %p102 = scmp.eq.s32.totalorder %s14, 0
    %p103 = por %p101, %p102
    %p104 = scmp.ne.s32.totalorder %s90, %s91
    %p105 = scmp.eq.s32.totalorder %s15, 3
    %p106 = por %p104, %p105
    %p108 = scmp.ne.s32.totalorder %s91, %s107
    %p109 = scmp.eq.s32.totalorder %s15, 0
    %p110 = por %p108, %p109
    %p111 = scmp.le.s32.totalorder 1, %s9
    %p112 = scmp.lt.s32.totalorder %s9, 5
    %p113 = pnand %p111, %p112
    %p114 = pneg %p113
    // Predicated region
    $region9: #{shiftmlp_forward.3} parent=5 // pred_check
      _
    $region10: #{shiftmlp_forward.3} parent=5 // pred_check_branch
      %116 = sbr.rel (%p113) target = $region12
    $region11: #{shiftmlp_forward.3} parent=5 // pred_region
      %s117 = ssub.s32 %s9, 1
      // Predicated region
      $region13: #{shiftmlp_forward.3} parent=11 // pred_check
        %p118 = pneg %p56
      $region14: #{shiftmlp_forward.3} parent=11 // pred_check_branch
        %120 = sbr.rel (%p118) target = $region16
      $region15: #{shiftmlp_forward.3} parent=11 // pred_region
        _
      $region16: #{shiftmlp_forward.3} parent=11 // pred_fallthru
        _
      // Predicated region
      $region17: #{shiftmlp_forward.3} parent=11 // pred_check
        %p121 = pneg %p77
      $region18: #{shiftmlp_forward.3} parent=11 // pred_check_branch
        %123 = sbr.rel (%p121) target = $region20
      $region19: #{shiftmlp_forward.3} parent=11 // pred_region
        _
      $region20: #{shiftmlp_forward.3} parent=11 // pred_fallthru
        _
    $region12: #{shiftmlp_forward.3} parent=5 // pred_fallthru
      _
    %p124 = scmp.lt.s32.totalorder %s9, 4
    // Predicated region
    $region21: #{shiftmlp_forward.3} parent=5 // pred_check
      %p125 = pneg %p124
    $region22: #{shiftmlp_forward.3} parent=5 // pred_check_branch
      %127 = sbr.rel (%p125) target = $region24
    $region23: #{shiftmlp_forward.3} parent=5 // pred_region
      // Predicated region
      $region25: #{shiftmlp_forward.3} parent=23 // pred_check
        %p128 = pneg %p29
      $region26: #{shiftmlp_forward.3} parent=23 // pred_check_branch
        %130 = sbr.rel (%p128) target = $region28
      $region27: #{shiftmlp_forward.3} parent=23 // pred_region
        %s131 = smul.u32 16, %s9
        %p132 = scmp.lt.s32.totalorder %s131, 63
        %s133 = scalar_select %p132, %s131, 63
        %s134 = smul.addr %s133, 8
        %s135 = scalar_lea.vmem %s0, %s134
        %s136 = smul.u32 16, %s9
      $region28: #{shiftmlp_forward.3} parent=23 // pred_fallthru
        _
    $region24: #{shiftmlp_forward.3} parent=5 // pred_fallthru
      _
    %p137 = scmp.le.s32.totalorder 1, %s9
    %p138 = scmp.lt.s32.totalorder %s9, 5
    %p139 = pnand %p137, %p138
    %p140 = pneg %p139
    // Predicated region
    $region29: #{shiftmlp_forward.3} parent=5 // pred_check
      _
    $region30: #{shiftmlp_forward.3} parent=5 // pred_check_branch
      %142 = sbr.rel (%p139) target = $region32
    $region31: #{shiftmlp_forward.3} parent=5 // pred_region
      %s143 = ssub.s32 %s9, 1
      %s144 = smul.u32 16, %s14
      %p145 = scmp.lt.s32.totalorder %s144, 63
      %s146 = scalar_select %p145, %s144, 63
      %s147 = smul.addr %s146, 8
      %s148 = scalar_lea.vmem %s0, %s147
      %p149 = pneg %p35
      %p150 = pneg %p32
      %p151 = pneg %p56
      %p152 = pneg %p53
      %p153 = pneg %p77
      %p154 = pneg %p74
      %p155 = pneg %p103
      %p156 = pneg %p100
      %s157 = smul.u32 16, %s14
      %p158 = scmp.lt.s32.totalorder %s157, 63
      %s159 = scalar_select %p158, %s157, 63
      %s160 = smul.addr %s159, 8
      %s161 = scalar_lea.vmem %s3, %s160
      %s162 = smul.u32 16, %s14
      %p163 = scmp.lt.s32.totalorder %s162, 63
      %s164 = scalar_select %p163, %s162, 63
      %s165 = smul.addr %s164, 8
      %s166 = scalar_lea.vmem %s0, %s165
      %s167 = smul.u32 16, %s14
      %s168 = smul.u32 16, %s14
      %p169 = scmp.lt.s32.totalorder %s168, 63
      %s170 = scalar_select %p169, %s168, 63
      %s171 = smul.addr %s170, 8
      %s172 = scalar_lea.vmem %s3, %s171
      %s173 = smul.u32 16, %s14
      %v174 = vld [vmem:[%s166] sm:$0xff]
      %v175 = vld [vmem:[%s166 + $0x8] sm:$0xff]
      %v176 = vld [vmem:[%s166 + $0x10] sm:$0xff]
      %v177 = vld [vmem:[%s166 + $0x18] sm:$0xff]
      %v178 = vld [vmem:[%s166 + $0x20] sm:$0xff]
      %v179 = vld [vmem:[%s166 + $0x28] sm:$0xff]
      %v180 = vld [vmem:[%s166 + $0x30] sm:$0xff]
      %v181 = vld [vmem:[%s166 + $0x38] sm:$0xff]
      %v182 = vld [vmem:[%s166 + $0x40] sm:$0xff]
      %v183 = vld [vmem:[%s166 + $0x48] sm:$0xff]
      %v184 = vld [vmem:[%s166 + $0x50] sm:$0xff]
      %v185 = vld [vmem:[%s166 + $0x58] sm:$0xff]
      %v186 = vld [vmem:[%s166 + $0x60] sm:$0xff]
      %v187 = vld [vmem:[%s166 + $0x68] sm:$0xff]
      %v188 = vld [vmem:[%s166 + $0x70] sm:$0xff]
      %v189 = vld [vmem:[%s166 + $0x78] sm:$0xff]
      %v190 = vld [vmem:[%s1] sm:$0xff]
      %v191 = vld [vmem:[%s1 + $0x8] sm:$0xff]
      %v192 = vld [vmem:[%s1 + $0x10] sm:$0xff]
      %v193 = vld [vmem:[%s1 + $0x18] sm:$0xff]
      %v194 = vld [vmem:[%s2] sm:$0x1]
      %v196 = vlaneseq
      %v197 = vshrl.u32 %v196, 7
      %v198 = vsub.s32 0, %v197
      %v199 = vrot.slane %v194, %v198
      %vm201 = vcmask 261120
      %v203 = vsel %vm201, %v174, 0
      %v206 = vsel %vm201, %v175, 0
      %v209 = vsel %vm201, %v176, 0
      %v212 = vsel %vm201, %v177, 0
      %v215 = vsel %vm201, %v178, 0
      %v218 = vsel %vm201, %v179, 0
      %v221 = vsel %vm201, %v180, 0
      %v224 = vsel %vm201, %v181, 0
      %v227 = vsel %vm201, %v182, 0
      %v230 = vsel %vm201, %v183, 0
      %v233 = vsel %vm201, %v184, 0
      %v236 = vsel %vm201, %v185, 0
      %v239 = vsel %vm201, %v186, 0
      %v242 = vsel %vm201, %v187, 0
      %v245 = vsel %vm201, %v188, 0
      %v248 = vsel %vm201, %v189, 0
      %250 = vmatprep.subr.mxu0 0.0
      %251 = vmatpush1.msra.mxu0 %v190
      %252 = vmatprep.subr.mxu0 0.0
      %253 = vmatpush1.msra.mxu0 %v191
      %254 = vmatprep.subr.mxu0 0.0
      %255 = vmatpush1.msra.mxu0 %v192
      %256 = vmatprep.subr.mxu0 0.0
      %257 = vmatpush1.msra.mxu0 %v193
      %258 = vmatprep.subr.mxu0 0.0
      %259 = vmatpush1.msra.mxu0 0.0
      %260 = vmatprep.subr.mxu0 0.0
      %261 = vmatpush1.msra.mxu0 0.0
      %262 = vmatprep.subr.mxu0 0.0
      %263 = vmatpush1.msra.mxu0 0.0
      %264 = vmatprep.subr.mxu0 0.0
      %265 = vmatpush1.msra.mxu0 0.0
      %266 = vmatprep.subr.mxu0 0.0
      %267 = vmatpush1.msra.mxu0 0.0
      %268 = vmatprep.subr.mxu0 0.0
      %269 = vmatpush1.msra.mxu0 0.0
      %270 = vmatprep.subr.mxu0 0.0
      %271 = vmatpush1.msra.mxu0 0.0
      %272 = vmatprep.subr.mxu0 0.0
      %273 = vmatpush1.msra.mxu0 0.0
      %274 = vmatprep.subr.mxu0 0.0
      %275 = vmatpush1.msra.mxu0 0.0
      %276 = vmatprep.subr.mxu0 0.0
      %277 = vmatpush1.msra.mxu0 0.0
      %278 = vmatprep.subr.mxu0 0.0
      %279 = vmatpush1.msra.mxu0 0.0
      %280 = vmatprep.subr.mxu0 0.0
      %281 = vmatpush1.msra.mxu0 0.0
      %282 = vmatprep.subr.mxu0 0.0
      %283 = vmatpush1.msra.mxu0 0.0
      %284 = vmatprep.subr.mxu0 0.0
      %285 = vmatpush1.msra.mxu0 0.0
      %286 = vmatprep.subr.mxu0 0.0
      %287 = vmatpush1.msra.mxu0 0.0
      %288 = vmatprep.subr.mxu0 0.0
      %289 = vmatpush1.msra.mxu0 0.0
      %290 = vmatprep.subr.mxu0 0.0
      %291 = vmatpush1.msra.mxu0 0.0
      %292 = vmatprep.subr.mxu0 0.0
      %293 = vmatpush1.msra.mxu0 0.0
      %294 = vmatprep.subr.mxu0 0.0
      %295 = vmatpush1.msra.mxu0 0.0
      %296 = vmatprep.subr.mxu0 0.0
      %297 = vmatpush1.msra.mxu0 0.0
      %298 = vmatprep.subr.mxu0 0.0
      %299 = vmatpush1.msra.mxu0 0.0
      %300 = vmatprep.subr.mxu0 0.0
      %301 = vmatpush1.msra.mxu0 0.0
      %302 = vmatprep.subr.mxu0 0.0
      %303 = vmatpush1.msra.mxu0 0.0
      %304 = vmatprep.subr.mxu0 0.0
      %305 = vmatpush1.msra.mxu0 0.0
      %306 = vmatprep.subr.mxu0 0.0
      %307 = vmatpush1.msra.mxu0 0.0
      %308 = vmatprep.subr.mxu0 0.0
      %309 = vmatpush1.msra.mxu0 0.0
      %310 = vmatprep.subr.mxu0 0.0
      %311 = vmatpush1.msra.mxu0 0.0
      %312 = vmatprep.subr.mxu0 0.0
      %313 = vmatpush1.msra.mxu0 0.0
      %314 = vmatprep.mubr.f32.mxu0 0.0
      %315 = vmatmul.mubr.f32.gmra.mrb[0].mxu0 %v203
      %v316 = vpop.f32.mrb[0].mxu0
      %v317 = vadd.f32 %v199, %v316
      %v318 = vpop.f32.mrb[0].mxu0
      %319 = vmatprep.mubr.f32.mxu0 0.0
      %320 = vmatmul.mubr.f32.gmra.mrb[0].mxu0 %v206
      %v321 = vpop.f32.mrb[0].mxu0
      %v322 = vadd.f32 %v199, %v321
      %v323 = vpop.f32.mrb[0].mxu0
      %324 = vmatprep.mubr.f32.mxu0 0.0
      %325 = vmatmul.mubr.f32.gmra.mrb[0].mxu0 %v209
      %v326 = vpop.f32.mrb[0].mxu0
      %v327 = vadd.f32 %v199, %v326
      %v328 = vpop.f32.mrb[0].mxu0
      %329 = vmatprep.mubr.f32.mxu0 0.0
      %330 = vmatmul.mubr.f32.gmra.mrb[0].mxu0 %v212
      %v331 = vpop.f32.mrb[0].mxu0
      %v332 = vadd.f32 %v199, %v331
      %v333 = vpop.f32.mrb[0].mxu0
      %334 = vmatprep.mubr.f32.mxu0 0.0
      %335 = vmatmul.mubr.f32.gmra.mrb[0].mxu0 %v215
      %v336 = vpop.f32.mrb[0].mxu0
      %v337 = vadd.f32 %v199, %v336
      %v338 = vpop.f32.mrb[0].mxu0
      %339 = vmatprep.mubr.f32.mxu0 0.0
      %340 = vmatmul.mubr.f32.gmra.mrb[0].mxu0 %v218
      %v341 = vpop.f32.mrb[0].mxu0
      %v342 = vadd.f32 %v199, %v341
      %v343 = vpop.f32.mrb[0].mxu0
      %344 = vmatprep.mubr.f32.mxu0 0.0
      %345 = vmatmul.mubr.f32.gmra.mrb[0].mxu0 %v221
      %v346 = vpop.f32.mrb[0].mxu0
      %v347 = vadd.f32 %v199, %v346
      %v348 = vpop.f32.mrb[0].mxu0
      %349 = vmatprep.mubr.f32.mxu0 0.0
      %350 = vmatmul.mubr.f32.gmra.mrb[0].mxu0 %v224
      %v351 = vpop.f32.mrb[0].mxu0
      %v352 = vadd.f32 %v199, %v351
      %v353 = vpop.f32.mrb[0].mxu0
      %354 = vmatprep.mubr.f32.mxu0 0.0
      %355 = vmatmul.mubr.f32.gmra.mrb[0].mxu0 %v227
      %v356 = vpop.f32.mrb[0].mxu0
      %v357 = vadd.f32 %v199, %v356
      %v358 = vpop.f32.mrb[0].mxu0
      %359 = vmatprep.mubr.f32.mxu0 0.0
      %360 = vmatmul.mubr.f32.gmra.mrb[0].mxu0 %v230
      %v361 = vpop.f32.mrb[0].mxu0
      %v362 = vadd.f32 %v199, %v361
      %v363 = vpop.f32.mrb[0].mxu0
      %364 = vmatprep.mubr.f32.mxu0 0.0
      %365 = vmatmul.mubr.f32.gmra.mrb[0].mxu0 %v233
      %v366 = vpop.f32.mrb[0].mxu0
      %v367 = vadd.f32 %v199, %v366
      %v368 = vpop.f32.mrb[0].mxu0
      %369 = vmatprep.mubr.f32.mxu0 0.0
      %370 = vmatmul.mubr.f32.gmra.mrb[0].mxu0 %v236
      %v371 = vpop.f32.mrb[0].mxu0
      %v372 = vadd.f32 %v199, %v371
      %v373 = vpop.f32.mrb[0].mxu0
      %374 = vmatprep.mubr.f32.mxu0 0.0
      %375 = vmatmul.mubr.f32.gmra.mrb[0].mxu0 %v239
      %v376 = vpop.f32.mrb[0].mxu0
      %v377 = vadd.f32 %v199, %v376
      %v378 = vpop.f32.mrb[0].mxu0
      %379 = vmatprep.mubr.f32.mxu0 0.0
      %380 = vmatmul.mubr.f32.gmra.mrb[0].mxu0 %v242
      %v381 = vpop.f32.mrb[0].mxu0
      %v382 = vadd.f32 %v199, %v381
      %v383 = vpop.f32.mrb[0].mxu0
      %384 = vmatprep.mubr.f32.mxu0 0.0
      %385 = vmatmul.mubr.f32.gmra.mrb[0].mxu0 %v245
      %v386 = vpop.f32.mrb[0].mxu0
      %v387 = vadd.f32 %v199, %v386
      %v388 = vpop.f32.mrb[0].mxu0
      %389 = vmatprep.mubr.f32.mxu0 0.0
      %390 = vmatmul.mubr.f32.gmra.mrb[0].mxu0 %v248
      %v391 = vpop.f32.mrb[0].mxu0
      %v392 = vadd.f32 %v199, %v391
      %v393 = vpop.f32.mrb[0].mxu0
      %394 = vdwg.mxu0
      %395 = vst.msk [vmem:[%s172] sm:$0xff] %vm201, %v317
      %396 = vst.msk [vmem:[%s172 + $0x8] sm:$0xff] %vm201, %v322
      %397 = vst.msk [vmem:[%s172 + $0x10] sm:$0xff] %vm201, %v327
      %398 = vst.msk [vmem:[%s172 + $0x18] sm:$0xff] %vm201, %v332
      %399 = vst.msk [vmem:[%s172 + $0x20] sm:$0xff] %vm201, %v337
      %400 = vst.msk [vmem:[%s172 + $0x28] sm:$0xff] %vm201, %v342
      %401 = vst.msk [vmem:[%s172 + $0x30] sm:$0xff] %vm201, %v347
      %402 = vst.msk [vmem:[%s172 + $0x38] sm:$0xff] %vm201, %v352
      %403 = vst.msk [vmem:[%s172 + $0x40] sm:$0xff] %vm201, %v357
      %404 = vst.msk [vmem:[%s172 + $0x48] sm:$0xff] %vm201, %v362
      %405 = vst.msk [vmem:[%s172 + $0x50] sm:$0xff] %vm201, %v367
      %406 = vst.msk [vmem:[%s172 + $0x58] sm:$0xff] %vm201, %v372
      %407 = vst.msk [vmem:[%s172 + $0x60] sm:$0xff] %vm201, %v377
      %408 = vst.msk [vmem:[%s172 + $0x68] sm:$0xff] %vm201, %v382
      %409 = vst.msk [vmem:[%s172 + $0x70] sm:$0xff] %vm201, %v387
      %410 = vst.msk [vmem:[%s172 + $0x78] sm:$0xff] %vm201, %v392
      %s411 = smul.u32 16, %s14
      %p412 = scmp.lt.s32.totalorder %s411, 63
      %s413 = scalar_select %p412, %s411, 63
      %s414 = smul.addr %s413, 8
      %s415 = scalar_lea.vmem %s3, %s414
      // Predicated region
      $region33: #{shiftmlp_forward.3} parent=31 // pred_check
        %p416 = pneg %p100
      $region34: #{shiftmlp_forward.3} parent=31 // pred_check_branch
        %418 = sbr.rel (%p416) target = $region36
      $region35: #{shiftmlp_forward.3} parent=31 // pred_region
        %s419 = smul.u32 16, %s14
      $region36: #{shiftmlp_forward.3} parent=31 // pred_fallthru
        _
    $region32: #{shiftmlp_forward.3} parent=5 // pred_fallthru
      _
    %p420 = scmp.le.s32.totalorder 2, %s9
    // Predicated region
    $region37: #{shiftmlp_forward.3} parent=5 // pred_check
      %p421 = pneg %p420
    $region38: #{shiftmlp_forward.3} parent=5 // pred_check_branch
      %423 = sbr.rel (%p421) target = $region40
    $region39: #{shiftmlp_forward.3} parent=5 // pred_region
      %s424 = ssub.s32 %s9, 2
      // Predicated region
      $region41: #{shiftmlp_forward.3} parent=39 // pred_check
        %p425 = pneg %p106
      $region42: #{shiftmlp_forward.3} parent=39 // pred_check_branch
        %427 = sbr.rel (%p425) target = $region44
      $region43: #{shiftmlp_forward.3} parent=39 // pred_region
        %s428 = smul.u32 16, %s15
        %p429 = scmp.lt.s32.totalorder %s428, 63
        %s430 = scalar_select %p429, %s428, 63
        %s431 = smul.addr %s430, 8
        %s432 = scalar_lea.vmem %s3, %s431
      $region44: #{shiftmlp_forward.3} parent=39 // pred_fallthru
        _
    $region40: #{shiftmlp_forward.3} parent=5 // pred_fallthru
      _
  $region6: #{shiftmlp_forward.3} parent=0 // loop_footer
    %s13 = sadd.s32 1, %s9
  $region7: #{shiftmlp_forward.3} parent=0 // loop_footer_branch
    %8 = sbr.rel target = $region3
  $region8: #{shiftmlp_forward.3} parent=0 // loop_exit
    _

// kernel: shiftmlp_forward.4
$region0: #{shiftmlp_forward.4}
  #allocation0 [shape = 'u32[]', space=smem, size = 0x4, offset = 0x4, fixed_abs, tag = 'smem constant byte address 0x4 - core index']
  #allocation1 [shape = 'u32[144,128]{1,0:T(1,128)}', space=vmem, size = 0x12000, scoped, tag = 'internal scratch']
  #allocation2 [shape = 'f32[10,18,32]{2,1,0:T(8,128)}', space=vmem, size = 0x1e000, scoped, tag = 'scratch operand']
  %s0 = inlined_call_operand.vmem [shape: f32[2,16,16,32], index: 0, kind: input, shape index: {}, may-alias: {0,1,2}]
  %s1 = inlined_call_operand.vmem [shape: f32[2,16,16,32], index: 1, kind: input, shape index: {}, may-alias: {0,1,2}]
  %s2 = inlined_call_operand.vmem [shape: f32[2,16,16,32], index: 2, kind: input, shape index: {}, may-alias: {0,1,2}]
  %s3 = inlined_call_operand.vmem [shape: f32[3,3,32], index: 3, kind: input, shape index: {}]
  %s4 = inlined_call_operand.vmem [shape: f32[1,32], index: 4, kind: input, shape index: {}]
  %s5 = inlined_call_operand.vmem [shape: f32[2,16,16,32], index: 5, kind: output, shape index: {}]
  %s6 = sld [smem:[#allocation0]]
  $region69: #{shiftmlp_forward.4} parent=0
    _
  %s8 = ssub.s32 1, %s6
  %s9 = scalar_select 0, %s8, %s6
  loop: start=0, step=1, limit=6
  $region2: #{shiftmlp_forward.4} parent=0 // loop_pre_header
    _
  $region3: #{shiftmlp_forward.4} parent=0 // loop_header
    %s11 = sphi 0, %s15
    %p12 = scmp.ge.s32.totalorder %s11, 6
    %s18 = sphi 0, %s30
    %s19 = sphi 0, %s26
    %s20 = sphi 0, %s18
    %s21 = sphi 0, %s19
    %s22 = sphi 0, %s20
    %s23 = sphi 0, %s21
    %s35 = sphi 0, %s37
    %s38 = sphi 0, %s35
    %s39 = sphi 0, %s38
    %s55 = sphi 0, %s39
    %s71 = sphi 0, %s73
    %s74 = sphi 0, %s71
    %s75 = sphi 0, %s74
    %s91 = sphi 0, %s75
    %s107 = sphi 0, %s109
    %s110 = sphi 0, %s107
    %s111 = sphi 0, %s110
    %s127 = sphi 0, %s111
    %s131 = sphi 0, %s131
    %s133 = sphi 0, %s131
    %s134 = sphi 0, %s133
    %s148 = sphi 0, %s134
    %s152 = sphi 0, %s152
    %s154 = sphi 0, %s152
    %s155 = sphi 0, %s154
    %s169 = sphi 0, %s155
    %s177 = sphi 0, %s179
    %s180 = sphi 0, %s177
    %s181 = sphi 0, %s180
    %s197 = sphi 0, %s181
  $region4: #{shiftmlp_forward.4} parent=0 // loop_header_branch
    %14 = sbr.rel (%p12) target = $region8
  $region5: #{shiftmlp_forward.4} parent=0 // loop_body
    %s16 = ssub.s32 %s11, 1
    %s17 = ssub.s32 %s11, 2
    %s24 = sadd.s32 1, %s19
    %p25 = scmp.ge.s32.totalorder %s24, 2
    %s26 = scalar_select %p25, 0, %s24
    %s27 = sadd.s32 1, %s18
    %s28 = scalar_select %p25, %s27, %s18
    %p29 = scmp.ge.s32.totalorder %s28, 2
    %s30 = scalar_select %p29, 0, %s28
    %s31 = ssub.s32 %s18, %s30
    %s32 = ssub.s32 %s19, %s26
    %s33 = sor.u32 %s31, %s32
    %p34 = scmp.eq.s32.totalorder %s33, 0
    %s36 = sadd.s32 %s35, 1
    %s37 = scalar_select %p34, %s35, %s36
    %p40 = pneg %p34
    %p41 = scmp.eq.s32.totalorder %s11, 3
    %p42 = por %p40, %p41
    %p43 = scmp.ne.s32.totalorder %s35, %s38
    %p44 = scmp.eq.s32.totalorder %s11, 0
    %p45 = por %p43, %p44
    %p46 = scmp.ne.s32.totalorder %s35, %s38
    %p47 = scmp.eq.s32.totalorder %s16, 3
    %p48 = por %p46, %p47
    %p49 = scmp.ne.s32.totalorder %s38, %s39
    %p50 = scmp.eq.s32.totalorder %s16, 0
    %p51 = por %p49, %p50
    %p52 = scmp.ne.s32.totalorder %s38, %s39
    %p53 = scmp.eq.s32.totalorder %s17, 3
    %p54 = por %p52, %p53
    %p56 = scmp.ne.s32.totalorder %s39, %s55
    %p57 = scmp.eq.s32.totalorder %s17, 0
    %p58 = por %p56, %p57
    %s59 = smul.u32 %s19, 8
    %s60 = ssub.s32 %s59, 1
    %p61 = scmp.gt.s32.totalorder %s60, 0
    %s62 = scalar_select %p61, %s60, 0
    %s63 = smul.u32 %s26, 8
    %s64 = ssub.s32 %s63, 1
    %p65 = scmp.gt.s32.totalorder %s64, 0
    %s66 = scalar_select %p65, %s64, 0
    %s67 = ssub.s32 %s18, %s30
    %s68 = ssub.s32 %s62, %s66
    %s69 = sor.u32 %s67, %s68
    %p70 = scmp.eq.s32.totalorder %s69, 0
    %s72 = sadd.s32 %s71, 1
    %s73 = scalar_select %p70, %s71, %s72
    %p76 = pneg %p70
    %p77 = scmp.eq.s32.totalorder %s11, 3
    %p78 = por %p76, %p77
    %p79 = scmp.ne.s32.totalorder %s71, %s74
    %p80 = scmp.eq.s32.totalorder %s11, 0
    %p81 = por %p79, %p80
    %p82 = scmp.ne.s32.totalorder %s71, %s74
    %p83 = scmp.eq.s32.totalorder %s16, 3
    %p84 = por %p82, %p83
    %p85 = scmp.ne.s32.totalorder %s74, %s75
    %p86 = scmp.eq.s32.totalorder %s16, 0
    %p87 = por %p85, %p86
    %p88 = scmp.ne.s32.totalorder %s74, %s75
    %p89 = scmp.eq.s32.totalorder %s17, 3
    %p90 = por %p88, %p89
    %p92 = scmp.ne.s32.totalorder %s75, %s91
    %p93 = scmp.eq.s32.totalorder %s17, 0
    %p94 = por %p92, %p93
    %s95 = sadd.s32 %s19, 1
    %s96 = smul.u32 %s95, 8
    %p97 = scmp.lt.s32.totalorder %s96, 15
    %s98 = scalar_select %p97, %s96, 15
    %s99 = sadd.s32 %s26, 1
    %s100 = smul.u32 %s99, 8
    %p101 = scmp.lt.s32.totalorder %s100, 15
    %s102 = scalar_select %p101, %s100, 15
    %s103 = ssub.s32 %s18, %s30
    %s104 = ssub.s32 %s98, %s102
    %s105 = sor.u32 %s103, %s104
    %p106 = scmp.eq.s32.totalorder %s105, 0
    %s108 = sadd.s32 %s107, 1
    %s109 = scalar_select %p106, %s107, %s108
    %p112 = pneg %p106
    %p113 = scmp.eq.s32.totalorder %s11, 3
    %p114 = por %p112, %p113
    %p115 = scmp.ne.s32.totalorder %s107, %s110
    %p116 = scmp.eq.s32.totalorder %s11, 0
    %p117 = por %p115, %p116
    %p118 = scmp.ne.s32.totalorder %s107, %s110
    %p119 = scmp.eq.s32.totalorder %s16, 3
    %p120 = por %p118, %p119
    %p121 = scmp.ne.s32.totalorder %s110, %s111
    %p122 = scmp.eq.s32.totalorder %s16, 0
    %p123 = por %p121, %p122
    %p124 = scmp.ne.s32.totalorder %s110, %s111
    %p125 = scmp.eq.s32.totalorder %s17, 3
    %p126 = por %p124, %p125
    %p128 = scmp.ne.s32.totalorder %s111, %s127
    %p129 = scmp.eq.s32.totalorder %s17, 0
    %p130 = por %p128, %p129
    %s132 = sadd.s32 %s131, 1
    %p135 = scmp.eq.s32.totalorder %s11, 3
    %p136 = scmp.ne.s32.totalorder %s131, %s133
    %p137 = scmp.eq.s32.totalorder %s11, 0
    %p138 = por %p136, %p137
    %p139 = scmp.ne.s32.totalorder %s131, %s133
    %p140 = scmp.eq.s32.totalorder %s16, 3
    %p141 = por %p139, %p140
    %p142 = scmp.ne.s32.totalorder %s133, %s134
    %p143 = scmp.eq.s32.totalorder %s16, 0
    %p144 = por %p142, %p143
    %p145 = scmp.ne.s32.totalorder %s133, %s134
    %p146 = scmp.eq.s32.totalorder %s17, 3
    %p147 = por %p145, %p146
    %p149 = scmp.ne.s32.totalorder %s134, %s148
    %p150 = scmp.eq.s32.totalorder %s17, 0
    %p151 = por %p149, %p150
    %s153 = sadd.s32 %s152, 1
    %p156 = scmp.eq.s32.totalorder %s11, 3
    %p157 = scmp.ne.s32.totalorder %s152, %s154
    %p158 = scmp.eq.s32.totalorder %s11, 0
    %p159 = por %p157, %p158
    %p160 = scmp.ne.s32.totalorder %s152, %s154
    %p161 = scmp.eq.s32.totalorder %s16, 3
    %p162 = por %p160, %p161
    %p163 = scmp.ne.s32.totalorder %s154, %s155
    %p164 = scmp.eq.s32.totalorder %s16, 0
    %p165 = por %p163, %p164
    %p166 = scmp.ne.s32.totalorder %s154, %s155
    %p167 = scmp.eq.s32.totalorder %s17, 3
    %p168 = por %p166, %p167
    %p170 = scmp.ne.s32.totalorder %s155, %s169
    %p171 = scmp.eq.s32.totalorder %s17, 0
    %p172 = por %p170, %p171
    %s173 = ssub.s32 %s18, %s30
    %s174 = ssub.s32 %s19, %s26
    %s175 = sor.u32 %s173, %s174
    %p176 = scmp.eq.s32.totalorder %s175, 0
    %s178 = sadd.s32 %s177, 1
    %s179 = scalar_select %p176, %s177, %s178
    %p182 = pneg %p176
    %p183 = scmp.eq.s32.totalorder %s11, 3
    %p184 = por %p182, %p183
    %p185 = scmp.ne.s32.totalorder %s177, %s180
    %p186 = scmp.eq.s32.totalorder %s11, 0
    %p187 = por %p185, %p186
    %p188 = scmp.ne.s32.totalorder %s177, %s180
    %p189 = scmp.eq.s32.totalorder %s16, 3
    %p190 = por %p188, %p189
    %p191 = scmp.ne.s32.totalorder %s180, %s181
    %p192 = scmp.eq.s32.totalorder %s16, 0
    %p193 = por %p191, %p192
    %p194 = scmp.ne.s32.totalorder %s180, %s181
    %p195 = scmp.eq.s32.totalorder %s17, 3
    %p196 = por %p194, %p195
    %p198 = scmp.ne.s32.totalorder %s181, %s197
    %p199 = scmp.eq.s32.totalorder %s17, 0
    %p200 = por %p198, %p199
    %p201 = scmp.le.s32.totalorder 1, %s11
    %p202 = scmp.lt.s32.totalorder %s11, 5
    %p203 = pnand %p201, %p202
    %p204 = pneg %p203
    // Predicated region
    $region9: #{shiftmlp_forward.4} parent=5 // pred_check
      _
    $region10: #{shiftmlp_forward.4} parent=5 // pred_check_branch
      %206 = sbr.rel (%p203) target = $region12
    $region11: #{shiftmlp_forward.4} parent=5 // pred_region
      %s207 = ssub.s32 %s11, 1
      // Predicated region
      $region13: #{shiftmlp_forward.4} parent=11 // pred_check
        %p208 = pneg %p144
      $region14: #{shiftmlp_forward.4} parent=11 // pred_check_branch
        %210 = sbr.rel (%p208) target = $region16
      $region15: #{shiftmlp_forward.4} parent=11 // pred_region
        _
      $region16: #{shiftmlp_forward.4} parent=11 // pred_fallthru
        _
      // Predicated region
      $region17: #{shiftmlp_forward.4} parent=11 // pred_check
        %p211 = pneg %p165
      $region18: #{shiftmlp_forward.4} parent=11 // pred_check_branch
        %213 = sbr.rel (%p211) target = $region20
      $region19: #{shiftmlp_forward.4} parent=11 // pred_region
        _
      $region20: #{shiftmlp_forward.4} parent=11 // pred_fallthru
        _
    $region12: #{shiftmlp_forward.4} parent=5 // pred_fallthru
      _
    %p214 = scmp.lt.s32.totalorder %s11, 4
    // Predicated region
    $region21: #{shiftmlp_forward.4} parent=5 // pred_check
      %p215 = pneg %p214
    $region22: #{shiftmlp_forward.4} parent=5 // pred_check_branch
      %217 = sbr.rel (%p215) target = $region24
    $region23: #{shiftmlp_forward.4} parent=5 // pred_region
      // Predicated region
      $region25: #{shiftmlp_forward.4} parent=23 // pred_check
        %p218 = pneg %p45
      $region26: #{shiftmlp_forward.4} parent=23 // pred_check_branch
        %220 = sbr.rel (%p218) target = $region28
      $region27: #{shiftmlp_forward.4} parent=23 // pred_region
        %s221 = smul.u32 8, %s19
        %p222 = scmp.lt.s32.totalorder %s18, 1
        %s223 = scalar_select %p222, %s18, 1
        %p224 = scmp.lt.s32.totalorder %s221, 15
        %s225 = scalar_select %p224, %s221, 15
        %s226 = smul.addr %s225, 2
        %s227 = smul.addr %s223, 32
        %s228 = sadd.s32 %s226, %s227
        %s229 = smul.addr %s228, 8
        %s230 = scalar_lea.vmem %s0, %s229
        %s231 = smul.u32 8, %s19
      $region28: #{shiftmlp_forward.4} parent=23 // pred_fallthru
        _
      // Predicated region
      $region29: #{shiftmlp_forward.4} parent=23 // pred_check
        %p232 = pneg %p81
      $region30: #{shiftmlp_forward.4} parent=23 // pred_check_branch
        %234 = sbr.rel (%p232) target = $region32
      $region31: #{shiftmlp_forward.4} parent=23 // pred_region
        %s235 = smul.u32 %s19, 8
        %s236 = ssub.s32 %s235, 1
        %p237 = scmp.gt.s32.totalorder %s236, 0
        %s238 = scalar_select %p237, %s236, 0
        %p239 = scmp.lt.s32.totalorder %s18, 1
        %s240 = scalar_select %p239, %s18, 1
        %p241 = scmp.lt.s32.totalorder %s238, 15
        %s242 = scalar_select %p241, %s238, 15
        %s243 = smul.addr %s242, 2
        %s244 = smul.addr %s240, 32
        %s245 = sadd.s32 %s243, %s244
        %s246 = smul.addr %s245, 8
        %s247 = scalar_lea.vmem %s1, %s246
        %s248 = smul.u32 %s19, 8
        %s249 = ssub.s32 %s248, 1
        %p250 = scmp.gt.s32.totalorder %s249, 0
        %s251 = scalar_select %p250, %s249, 0
      $region32: #{shiftmlp_forward.4} parent=23 // pred_fallthru
        _
      // Predicated region
      $region33: #{shiftmlp_forward.4} parent=23 // pred_check
        %p252 = pneg %p117
      $region34: #{shiftmlp_forward.4} parent=23 // pred_check_branch
        %254 = sbr.rel (%p252) target = $region36
      $region35: #{shiftmlp_forward.4} parent=23 // pred_region
        %s255 = sadd.s32 %s19, 1
        %s256 = smul.u32 %s255, 8
        %p257 = scmp.lt.s32.totalorder %s256, 15
        %s258 = scalar_select %p257, %s256, 15
        %p259 = scmp.lt.s32.totalorder %s18, 1
        %s260 = scalar_select %p259, %s18, 1
        %p261 = scmp.lt.s32.totalorder %s258, 15
        %s262 = scalar_select %p261, %s258, 15
        %s263 = smul.addr %s262, 2
        %s264 = smul.addr %s260, 32
        %s265 = sadd.s32 %s263, %s264
        %s266 = smul.addr %s265, 8
        %s267 = scalar_lea.vmem %s2, %s266
        %s268 = sadd.s32 %s19, 1
        %s269 = smul.u32 %s268, 8
        %p270 = scmp.lt.s32.totalorder %s269, 15
        %s271 = scalar_select %p270, %s269, 15
      $region36: #{shiftmlp_forward.4} parent=23 // pred_fallthru
        _
    $region24: #{shiftmlp_forward.4} parent=5 // pred_fallthru
      _
    %p272 = scmp.le.s32.totalorder 1, %s11
    %p273 = scmp.lt.s32.totalorder %s11, 5
    %p274 = pnand %p272, %p273
    %p275 = pneg %p274
    // Predicated region
    $region37: #{shiftmlp_forward.4} parent=5 // pred_check
      _
    $region38: #{shiftmlp_forward.4} parent=5 // pred_check_branch
      %277 = sbr.rel (%p274) target = $region40
    $region39: #{shiftmlp_forward.4} parent=5 // pred_region
      %s278 = ssub.s32 %s11, 1
      %s279 = smul.u32 8, %s21
      %p280 = scmp.lt.s32.totalorder %s20, 1
      %s281 = scalar_select %p280, %s20, 1
      %p282 = scmp.lt.s32.totalorder %s279, 15
      %s283 = scalar_select %p282, %s279, 15
      %s284 = smul.addr %s283, 2
      %s285 = smul.addr %s281, 32
      %s286 = sadd.s32 %s284, %s285
      %s287 = smul.addr %s286, 8
      %s288 = scalar_lea.vmem %s0, %s287
      %p289 = pneg %p51
      %p290 = pneg %p48
      %s291 = smul.u32 %s21, 8
      %s292 = ssub.s32 %s291, 1
      %p293 = scmp.gt.s32.totalorder %s292, 0
      %s294 = scalar_select %p293, %s292, 0
      %p295 = scmp.lt.s32.totalorder %s20, 1
      %s296 = scalar_select %p295, %s20, 1
      %p297 = scmp.lt.s32.totalorder %s294, 15
      %s298 = scalar_select %p297, %s294, 15
      %s299 = smul.addr %s298, 2
      %s300 = smul.addr %s296, 32
      %s301 = sadd.s32 %s299, %s300
      %s302 = smul.addr %s301, 8
      %s303 = scalar_lea.vmem %s1, %s302
      %p304 = pneg %p87
      %p305 = pneg %p84
      %s306 = sadd.s32 %s21, 1
      %s307 = smul.u32 %s306, 8
      %p308 = scmp.lt.s32.totalorder %s307, 15
      %s309 = scalar_select %p308, %s307, 15
      %p310 = scmp.lt.s32.totalorder %s20, 1
      %s311 = scalar_select %p310, %s20, 1
      %p312 = scmp.lt.s32.totalorder %s309, 15
      %s313 = scalar_select %p312, %s309, 15
      %s314 = smul.addr %s313, 2
      %s315 = smul.addr %s311, 32
      %s316 = sadd.s32 %s314, %s315
      %s317 = smul.addr %s316, 8
      %s318 = scalar_lea.vmem %s2, %s317
      %p319 = pneg %p123
      %p320 = pneg %p120
      %p321 = pneg %p144
      %p322 = pneg %p141
      %p323 = pneg %p165
      %p324 = pneg %p162
      %p325 = pneg %p193
      %p326 = pneg %p190
      %s327 = smul.u32 8, %s21
      %p328 = scmp.lt.s32.totalorder %s20, 1
      %s329 = scalar_select %p328, %s20, 1
      %p330 = scmp.lt.s32.totalorder %s327, 15
      %s331 = scalar_select %p330, %s327, 15
      %s332 = smul.addr %s331, 2
      %s333 = smul.addr %s329, 32
      %s334 = sadd.s32 %s332, %s333
      %s335 = smul.addr %s334, 8
      %s336 = scalar_lea.vmem %s5, %s335
      %s337 = smul.u32 8, %s21
      %p338 = scmp.lt.s32.totalorder %s20, 1
      %s339 = scalar_select %p338, %s20, 1
      %p340 = scmp.lt.s32.totalorder %s337, 15
      %s341 = scalar_select %p340, %s337, 15
      %s342 = smul.addr %s341, 2
      %s343 = smul.addr %s339, 32
      %s344 = sadd.s32 %s342, %s343
      %s345 = smul.addr %s344, 8
      %s346 = scalar_lea.vmem %s0, %s345
      %s347 = smul.u32 8, %s21
      %s348 = smul.u32 %s21, 8
      %s349 = ssub.s32 %s348, 1
      %p350 = scmp.gt.s32.totalorder %s349, 0
      %s351 = scalar_select %p350, %s349, 0
      %p352 = scmp.lt.s32.totalorder %s20, 1
      %s353 = scalar_select %p352, %s20, 1
      %p354 = scmp.lt.s32.totalorder %s351, 15
      %s355 = scalar_select %p354, %s351, 15
      %s356 = smul.addr %s355, 2
      %s357 = smul.addr %s353, 32
      %s358 = sadd.s32 %s356, %s357
      %s359 = smul.addr %s358, 8
      %s360 = scalar_lea.vmem %s1, %s359
      %s361 = smul.u32 %s21, 8
      %s362 = ssub.s32 %s361, 1
      %p363 = scmp.gt.s32.totalorder %s362, 0
      %s364 = scalar_select %p363, %s362, 0
      %s365 = sadd.s32 %s21, 1
      %s366 = smul.u32 %s365, 8
      %p367 = scmp.lt.s32.totalorder %s366, 15
      %s368 = scalar_select %p367, %s366, 15
      %p369 = scmp.lt.s32.totalorder %s20, 1
      %s370 = scalar_select %p369, %s20, 1
      %p371 = scmp.lt.s32.totalorder %s368, 15
      %s372 = scalar_select %p371, %s368, 15
      %s373 = smul.addr %s372, 2
      %s374 = smul.addr %s370, 32
      %s375 = sadd.s32 %s373, %s374
      %s376 = smul.addr %s375, 8
      %s377 = scalar_lea.vmem %s2, %s376
      %s378 = sadd.s32 %s21, 1
      %s379 = smul.u32 %s378, 8
      %p380 = scmp.lt.s32.totalorder %s379, 15
      %s381 = scalar_select %p380, %s379, 15
      %s382 = smul.u32 8, %s21
      %p383 = scmp.lt.s32.totalorder %s20, 1
      %s384 = scalar_select %p383, %s20, 1
      %p385 = scmp.lt.s32.totalorder %s382, 15
      %s386 = scalar_select %p385, %s382, 15
      %s387 = smul.addr %s386, 2
      %s388 = smul.addr %s384, 32
      %s389 = sadd.s32 %s387, %s388
      %s390 = smul.addr %s389, 8
      %s391 = scalar_lea.vmem %s5, %s390
      %s392 = smul.u32 8, %s21
      %vm393 = vcmask 253952
      %394 = vst.msk [vmem:[#allocation2] sm:$0x1] %vm393, 0.0
      %395 = vst.msk [vmem:[#allocation2 + $0x18] sm:$0x1] %vm393, 0.0
      %396 = vst.msk [vmem:[#allocation2 + $0x30] sm:$0x1] %vm393, 0.0
      %397 = vst.msk [vmem:[#allocation2 + $0x48] sm:$0x1] %vm393, 0.0
      %398 = vst.msk [vmem:[#allocation2 + $0x60] sm:$0x1] %vm393, 0.0
      %399 = vst.msk [vmem:[#allocation2 + $0x78] sm:$0x1] %vm393, 0.0
      %400 = vst.msk [vmem:[#allocation2 + $0x90] sm:$0x1] %vm393, 0.0
      %401 = vst.msk [vmem:[#allocation2 + $0xa8] sm:$0x1] %vm393, 0.0
      %402 = vst.msk [vmem:[#allocation2 + $0xc0] sm:$0x1] %vm393, 0.0
      %403 = vst.msk [vmem:[#allocation2 + $0xd8] sm:$0x1] %vm393, 0.0
      %404 = vst.msk [vmem:[#allocation2 + $0x11] sm:$0x1] %vm393, 0.0
      %405 = vst.msk [vmem:[#allocation2 + $0x29] sm:$0x1] %vm393, 0.0
      %406 = vst.msk [vmem:[#allocation2 + $0x41] sm:$0x1] %vm393, 0.0
      %407 = vst.msk [vmem:[#allocation2 + $0x59] sm:$0x1] %vm393, 0.0
      %408 = vst.msk [vmem:[#allocation2 + $0x71] sm:$0x1] %vm393, 0.0
      %409 = vst.msk [vmem:[#allocation2 + $0x89] sm:$0x1] %vm393, 0.0
      %410 = vst.msk [vmem:[#allocation2 + $0xa1] sm:$0x1] %vm393, 0.0
      %411 = vst.msk [vmem:[#allocation2 + $0xb9] sm:$0x1] %vm393, 0.0
      %412 = vst.msk [vmem:[#allocation2 + $0xd1] sm:$0x1] %vm393, 0.0
      %413 = vst.msk [vmem:[#allocation2 + $0xe9] sm:$0x1] %vm393, 0.0
      %v414 = vld [vmem:[%s346] sm:$0xff]
      %v415 = vld [vmem:[%s346 + $0x8] sm:$0xff]
      %v416 = vld [vmem:[%s346 + $0x10] sm:$0xff]
      %v417 = vld [vmem:[%s346 + $0x18] sm:$0xff]
      %v418 = vld [vmem:[%s346 + $0x20] sm:$0xff]
      %v419 = vld [vmem:[%s346 + $0x28] sm:$0xff]
      %v420 = vld [vmem:[%s346 + $0x30] sm:$0xff]
      %v421 = vld [vmem:[%s346 + $0x38] sm:$0xff]
      %v422 = vld [vmem:[%s346 + $0x40] sm:$0xff]
      %v423 = vld [vmem:[%s346 + $0x48] sm:$0xff]
      %v424 = vld [vmem:[%s346 + $0x50] sm:$0xff]
      %v425 = vld [vmem:[%s346 + $0x58] sm:$0xff]
      %v426 = vld [vmem:[%s346 + $0x60] sm:$0xff]
      %v427 = vld [vmem:[%s346 + $0x68] sm:$0xff]
      %v428 = vld [vmem:[%s346 + $0x70] sm:$0xff]
      %v429 = vld [vmem:[%s346 + $0x78] sm:$0xff]
      %s430 = scalar_lea.vmem [#allocation2], 24
      %vm431 = vcmask 261120
      %432 = vst.msk [vmem:[%s430 + $0x1] sm:$0xff] %vm431, %v414
      %433 = vst.msk [vmem:[%s430 + $0x9] sm:$0xff] %vm431, %v415
      %434 = vst.msk [vmem:[%s430 + $0x19] sm:$0xff] %vm431, %v416
      %435 = vst.msk [vmem:[%s430 + $0x21] sm:$0xff] %vm431, %v417
      %436 = vst.msk [vmem:[%s430 + $0x31] sm:$0xff] %vm431, %v418
      %437 = vst.msk [vmem:[%s430 + $0x39] sm:$0xff] %vm431, %v419
      %438 = vst.msk [vmem:[%s430 + $0x49] sm:$0xff] %vm431, %v420
      %439 = vst.msk [vmem:[%s430 + $0x51] sm:$0xff] %vm431, %v421
      %440 = vst.msk [vmem:[%s430 + $0x61] sm:$0xff] %vm431, %v422
      %441 = vst.msk [vmem:[%s430 + $0x69] sm:$0xff] %vm431, %v423
      %442 = vst.msk [vmem:[%s430 + $0x79] sm:$0xff] %vm431, %v424
      %443 = vst.msk [vmem:[%s430 + $0x81] sm:$0xff] %vm431, %v425
      %444 = vst.msk [vmem:[%s430 + $0x91] sm:$0xff] %vm431, %v426
      %445 = vst.msk [vmem:[%s430 + $0x99] sm:$0xff] %vm431, %v427
      %446 = vst.msk [vmem:[%s430 + $0xa9] sm:$0xff] %vm431, %v428
      %447 = vst.msk [vmem:[%s430 + $0xb1] sm:$0xff] %vm431, %v429
      %p448 = scmp.eq.s32.totalorder %s21, 0
      // Predicated region
      $region41: #{shiftmlp_forward.4} parent=39 // pred_check
        %p449 = pneg %p448
      $region42: #{shiftmlp_forward.4} parent=39 // pred_check_branch
        %451 = sbr.rel (%p449) target = $region44
      $region43: #{shiftmlp_forward.4} parent=39 // pred_region
        %452 = vst.msk [vmem:[#allocation2 + $0x1] sm:$0xff] %vm431, 0.0
        %453 = vst.msk [vmem:[#allocation2 + $0x9] sm:$0xff] %vm431, 0.0
      $region44: #{shiftmlp_forward.4} parent=39 // pred_fallthru
        _
      %p454 = scmp.ne.s32.totalorder %s21, 0
      // Predicated region
      $region45: #{shiftmlp_forward.4} parent=39 // pred_check
        %p455 = pneg %p454
      $region46: #{shiftmlp_forward.4} parent=39 // pred_check_branch
        %457 = sbr.rel (%p455) target = $region48
      $region47: #{shiftmlp_forward.4} parent=39 // pred_region
        %v458 = vld [vmem:[%s360] sm:$0xff]
        %v459 = vld [vmem:[%s360 + $0x8] sm:$0xff]
        %460 = vst.msk [vmem:[#allocation2 + $0x1] sm:$0xff] %vm431, %v458
        %461 = vst.msk [vmem:[#allocation2 + $0x9] sm:$0xff] %vm431, %v459
      $region48: #{shiftmlp_forward.4} parent=39 // pred_fallthru
        _
      %p462 = scmp.eq.s32.totalorder %s21, 1
      // Predicated region
      $region49: #{shiftmlp_forward.4} parent=39 // pred_check
        %p463 = pneg %p462
      $region50: #{shiftmlp_forward.4} parent=39 // pred_check_branch
        %465 = sbr.rel (%p463) target = $region52
      $region51: #{shiftmlp_forward.4} parent=39 // pred_region
        %s466 = scalar_lea.vmem [#allocation2], 216
        %467 = vst.msk [vmem:[%s466 + $0x1] sm:$0xff] %vm431, 0.0
        %468 = vst.msk [vmem:[%s466 + $0x9] sm:$0xff] %vm431, 0.0
      $region52: #{shiftmlp_forward.4} parent=39 // pred_fallthru
        _
      %p469 = scmp.ne.s32.totalorder %s21, 1
      // Predicated region
      $region53: #{shiftmlp_forward.4} parent=39 // pred_check
        %p470 = pneg %p469
      $region54: #{shiftmlp_forward.4} parent=39 // pred_check_branch
        %472 = sbr.rel (%p470) target = $region56
      $region55: #{shiftmlp_forward.4} parent=39 // pred_region
        %v473 = vld [vmem:[%s377] sm:$0xff]
        %v474 = vld [vmem:[%s377 + $0x8] sm:$0xff]
        %s475 = scalar_lea.vmem [#allocation2], 216
        %476 = vst.msk [vmem:[%s475 + $0x1] sm:$0xff] %vm431, %v473
        %477 = vst.msk [vmem:[%s475 + $0x9] sm:$0xff] %vm431, %v474
      $region56: #{shiftmlp_forward.4} parent=39 // pred_fallthru
        _
      %v478 = vld [vmem:[%s4] sm:$0x1]
      %v480 = vlaneseq
      %v481 = vshrl.u32 %v480, 7
      %v482 = vsub.s32 0, %v481
      %v483 = vrot.slane %v478, %v482
      %v485 = vld [vmem:[#allocation2] sm:$0xff]
      %v486 = vld [vmem:[#allocation2 + $0x8] sm:$0xff]
      %v487 = vld [vmem:[#allocation2 + $0x18] sm:$0xff]
      %v488 = vld [vmem:[#allocation2 + $0x20] sm:$0xff]
      %v489 = vld [vmem:[#allocation2 + $0x30] sm:$0xff]
      %v490 = vld [vmem:[#allocation2 + $0x38] sm:$0xff]
      %v491 = vld [vmem:[#allocation2 + $0x48] sm:$0xff]
      %v492 = vld [vmem:[#allocation2 + $0x50] sm:$0xff]
      %v493 = vld [vmem:[#allocation2 + $0x60] sm:$0xff]
      %v494 = vld [vmem:[#allocation2 + $0x68] sm:$0xff]
      %v495 = vld [vmem:[#allocation2 + $0x78] sm:$0xff]
      %v496 = vld [vmem:[#allocation2 + $0x80] sm:$0xff]
      %v497 = vld [vmem:[#allocation2 + $0x90] sm:$0xff]
      %v498 = vld [vmem:[#allocation2 + $0x98] sm:$0xff]
      %v499 = vld [vmem:[#allocation2 + $0xa8] sm:$0xff]
      %v500 = vld [vmem:[#allocation2 + $0xb0] sm:$0xff]
      %v501 = vld [vmem:[%s3] sm:$0x1]
      %v502 = vlaneseq
      %v503 = vshrl.u32 %v502, 7
      %v504 = vsub.s32 0, %v503
      %v505 = vrot.slane %v501, %v504
      %v506 = vmul.f32 %v485, %v505
      %v507 = vmul.f32 %v486, %v505
      %v508 = vmul.f32 %v487, %v505
      %v509 = vmul.f32 %v488, %v505
      %v510 = vmul.f32 %v489, %v505
      %v511 = vmul.f32 %v490, %v505
      %v512 = vmul.f32 %v491, %v505
      %v513 = vmul.f32 %v492, %v505
      %v514 = vmul.f32 %v493, %v505
      %v515 = vmul.f32 %v494, %v505
      %v516 = vmul.f32 %v495, %v505
      %v517 = vmul.f32 %v496, %v505
      %v518 = vmul.f32 %v497, %v505
      %v519 = vmul.f32 %v498, %v505
      %v520 = vmul.f32 %v499, %v505
      %v521 = vmul.f32 %v500, %v505
      %v522 = vadd.f32 %v483, %v506
      %v523 = vadd.f32 %v483, %v507
      %v524 = vadd.f32 %v483, %v508
      %v525 = vadd.f32 %v483, %v509
      %v526 = vadd.f32 %v483, %v510
      %v527 = vadd.f32 %v483, %v511
      %v528 = vadd.f32 %v483, %v512
      %v529 = vadd.f32 %v483, %v513
      %v530 = vadd.f32 %v483, %v514
      %v531 = vadd.f32 %v483, %v515
      %v532 = vadd.f32 %v483, %v516
      %v533 = vadd.f32 %v483, %v517
      %v534 = vadd.f32 %v483, %v518
      %v535 = vadd.f32 %v483, %v519
      %v536 = vadd.f32 %v483, %v520
      %v537 = vadd.f32 %v483, %v521
      %v538 = vld [vmem:[#allocation2 + $0x1] sm:$0xff]
      %v539 = vld [vmem:[#allocation2 + $0x9] sm:$0xff]
      %v540 = vld [vmem:[#allocation2 + $0x19] sm:$0xff]
      %v541 = vld [vmem:[#allocation2 + $0x21] sm:$0xff]
      %v542 = vld [vmem:[#allocation2 + $0x31] sm:$0xff]
      %v543 = vld [vmem:[#allocation2 + $0x39] sm:$0xff]
      %v544 = vld [vmem:[#allocation2 + $0x49] sm:$0xff]
      %v545 = vld [vmem:[#allocation2 + $0x51] sm:$0xff]
      %v546 = vld [vmem:[#allocation2 + $0x61] sm:$0xff]
      %v547 = vld [vmem:[#allocation2 + $0x69] sm:$0xff]
      %v548 = vld [vmem:[#allocation2 + $0x79] sm:$0xff]
      %v549 = vld [vmem:[#allocation2 + $0x81] sm:$0xff]
      %v550 = vld [vmem:[#allocation2 + $0x91] sm:$0xff]
      %v551 = vld [vmem:[#allocation2 + $0x99] sm:$0xff]
      %v552 = vld [vmem:[#allocation2 + $0xa9] sm:$0xff]
      %v553 = vld [vmem:[#allocation2 + $0xb1] sm:$0xff]
      %v554 = vld [vmem:[%s3 + $0x1] sm:$0x1]
      %v555 = vlaneseq
      %v556 = vshrl.u32 %v555, 7
      %v557 = vsub.s32 0, %v556
      %v558 = vrot.slane %v554, %v557
      %v559 = vmul.f32 %v538, %v558
      %v560 = vmul.f32 %v539, %v558
      %v561 = vmul.f32 %v540, %v558
      %v562 = vmul.f32 %v541, %v558
      %v563 = vmul.f32 %v542, %v558
      %v564 = vmul.f32 %v543, %v558
      %v565 = vmul.f32 %v544, %v558
      %v566 = vmul.f32 %v545, %v558
      %v567 = vmul.f32 %v546, %v558
      %v568 = vmul.f32 %v547, %v558
      %v569 = vmul.f32 %v548, %v558
      %v570 = vmul.f32 %v549, %v558
      %v571 = vmul.f32 %v550, %v558
      %v572 = vmul.f32 %v551, %v558
      %v573 = vmul.f32 %v552, %v558
      %v574 = vmul.f32 %v553, %v558
      %v575 = vadd.f32 %v522, %v559
      %v576 = vadd.f32 %v523, %v560
      %v577 = vadd.f32 %v524, %v561
      %v578 = vadd.f32 %v525, %v562
      %v579 = vadd.f32 %v526, %v563
      %v580 = vadd.f32 %v527, %v564
      %v581 = vadd.f32 %v528, %v565
      %v582 = vadd.f32 %v529, %v566
      %v583 = vadd.f32 %v530, %v567
      %v584 = vadd.f32 %v531, %v568
      %v585 = vadd.f32 %v532, %v569
      %v586 = vadd.f32 %v533, %v570
      %v587 = vadd.f32 %v534, %v571
      %v588 = vadd.f32 %v535, %v572
      %v589 = vadd.f32 %v536, %v573
      %v590 = vadd.f32 %v537, %v574
      %v591 = vld [vmem:[#allocation2 + $0x2] sm:$0xff]
      %v592 = vld [vmem:[#allocation2 + $0xa] sm:$0xff]
      %v593 = vld [vmem:[#allocation2 + $0x1a] sm:$0xff]
      %v594 = vld [vmem:[#allocation2 + $0x22] sm:$0xff]
      %v595 = vld [vmem:[#allocation2 + $0x32] sm:$0xff]
      %v596 = vld [vmem:[#allocation2 + $0x3a] sm:$0xff]
      %v597 = vld [vmem:[#allocation2 + $0x4a] sm:$0xff]
      %v598 = vld [vmem:[#allocation2 + $0x52] sm:$0xff]
      %v599 = vld [vmem:[#allocation2 + $0x62] sm:$0xff]
      %v600 = vld [vmem:[#allocation2 + $0x6a] sm:$0xff]
      %v601 = vld [vmem:[#allocation2 + $0x7a] sm:$0xff]
      %v602 = vld [vmem:[#allocation2 + $0x82] sm:$0xff]
      %v603 = vld [vmem:[#allocation2 + $0x92] sm:$0xff]
      %v604 = vld [vmem:[#allocation2 + $0x9a] sm:$0xff]
      %v605 = vld [vmem:[#allocation2 + $0xaa] sm:$0xff]
      %v606 = vld [vmem:[#allocation2 + $0xb2] sm:$0xff]
      %v607 = vld [vmem:[%s3 + $0x2] sm:$0x1]
      %v608 = vlaneseq
      %v609 = vshrl.u32 %v608, 7
      %v610 = vsub.s32 0, %v609
      %v611 = vrot.slane %v607, %v610
      %v612 = vmul.f32 %v591, %v611
      %v613 = vmul.f32 %v592, %v611
      %v614 = vmul.f32 %v593, %v611
      %v615 = vmul.f32 %v594, %v611
      %v616 = vmul.f32 %v595, %v611
      %v617 = vmul.f32 %v596, %v611
      %v618 = vmul.f32 %v597, %v611
      %v619 = vmul.f32 %v598, %v611
      %v620 = vmul.f32 %v599, %v611
      %v621 = vmul.f32 %v600, %v611
      %v622 = vmul.f32 %v601, %v611
      %v623 = vmul.f32 %v602, %v611
      %v624 = vmul.f32 %v603, %v611
      %v625 = vmul.f32 %v604, %v611
      %v626 = vmul.f32 %v605, %v611
      %v627 = vmul.f32 %v606, %v611
      %v628 = vadd.f32 %v575, %v612
      %v629 = vadd.f32 %v576, %v613
      %v630 = vadd.f32 %v577, %v614
      %v631 = vadd.f32 %v578, %v615
      %v632 = vadd.f32 %v579, %v616
      %v633 = vadd.f32 %v580, %v617
      %v634 = vadd.f32 %v581, %v618
      %v635 = vadd.f32 %v582, %v619
      %v636 = vadd.f32 %v583, %v620
      %v637 = vadd.f32 %v584, %v621
      %v638 = vadd.f32 %v585, %v622
      %v639 = vadd.f32 %v586, %v623
      %v640 = vadd.f32 %v587, %v624
      %v641 = vadd.f32 %v588, %v625
      %v642 = vadd.f32 %v589, %v626
      %v643 = vadd.f32 %v590, %v627
      %v644 = vld [vmem:[%s430] sm:$0xff]
      %v645 = vld [vmem:[%s430 + $0x8] sm:$0xff]
      %v646 = vld [vmem:[%s430 + $0x18] sm:$0xff]
      %v647 = vld [vmem:[%s430 + $0x20] sm:$0xff]
      %v648 = vld [vmem:[%s430 + $0x30] sm:$0xff]
      %v649 = vld [vmem:[%s430 + $0x38] sm:$0xff]
      %v650 = vld [vmem:[%s430 + $0x48] sm:$0xff]
      %v651 = vld [vmem:[%s430 + $0x50] sm:$0xff]
      %v652 = vld [vmem:[%s430 + $0x60] sm:$0xff]
      %v653 = vld [vmem:[%s430 + $0x68] sm:$0xff]
      %v654 = vld [vmem:[%s430 + $0x78] sm:$0xff]
      %v655 = vld [vmem:[%s430 + $0x80] sm:$0xff]
      %v656 = vld [vmem:[%s430 + $0x90] sm:$0xff]
      %v657 = vld [vmem:[%s430 + $0x98] sm:$0xff]
      %v658 = vld [vmem:[%s430 + $0xa8] sm:$0xff]
      %v659 = vld [vmem:[%s430 + $0xb0] sm:$0xff]
      %s660 = scalar_lea.vmem %s3, 4
      %v661 = vld [vmem:[%s660] sm:$0x1]
      %v662 = vlaneseq
      %v663 = vshrl.u32 %v662, 7
      %v664 = vsub.s32 0, %v663
      %v665 = vrot.slane %v661, %v664
      %v666 = vmul.f32 %v644, %v665
      %v667 = vmul.f32 %v645, %v665
      %v668 = vmul.f32 %v646, %v665
      %v669 = vmul.f32 %v647, %v665
      %v670 = vmul.f32 %v648, %v665
      %v671 = vmul.f32 %v649, %v665
      %v672 = vmul.f32 %v650, %v665
      %v673 = vmul.f32 %v651, %v665
      %v674 = vmul.f32 %v652, %v665
      %v675 = vmul.f32 %v653, %v665
      %v676 = vmul.f32 %v654, %v665
      %v677 = vmul.f32 %v655, %v665
      %v678 = vmul.f32 %v656, %v665
      %v679 = vmul.f32 %v657, %v665
      %v680 = vmul.f32 %v658, %v665
      %v681 = vmul.f32 %v659, %v665
      %v682 = vadd.f32 %v628, %v666
      %v683 = vadd.f32 %v629, %v667
      %v684 = vadd.f32 %v630, %v668
      %v685 = vadd.f32 %v631, %v669
      %v686 = vadd.f32 %v632, %v670
      %v687 = vadd.f32 %v633, %v671
      %v688 = vadd.f32 %v634, %v672
      %v689 = vadd.f32 %v635, %v673
      %v690 = vadd.f32 %v636, %v674
      %v691 = vadd.f32 %v637, %v675
      %v692 = vadd.f32 %v638, %v676
      %v693 = vadd.f32 %v639, %v677
      %v694 = vadd.f32 %v640, %v678
      %v695 = vadd.f32 %v641, %v679
      %v696 = vadd.f32 %v642, %v680
      %v697 = vadd.f32 %v643, %v681
      %v698 = vld [vmem:[%s430 + $0x1] sm:$0xff]
      %v699 = vld [vmem:[%s430 + $0x9] sm:$0xff]
      %v700 = vld [vmem:[%s430 + $0x19] sm:$0xff]
      %v701 = vld [vmem:[%s430 + $0x21] sm:$0xff]
      %v702 = vld [vmem:[%s430 + $0x31] sm:$0xff]
      %v703 = vld [vmem:[%s430 + $0x39] sm:$0xff]
      %v704 = vld [vmem:[%s430 + $0x49] sm:$0xff]
      %v705 = vld [vmem:[%s430 + $0x51] sm:$0xff]
      %v706 = vld [vmem:[%s430 + $0x61] sm:$0xff]
      %v707 = vld [vmem:[%s430 + $0x69] sm:$0xff]
      %v708 = vld [vmem:[%s430 + $0x79] sm:$0xff]
      %v709 = vld [vmem:[%s430 + $0x81] sm:$0xff]
      %v710 = vld [vmem:[%s430 + $0x91] sm:$0xff]
      %v711 = vld [vmem:[%s430 + $0x99] sm:$0xff]
      %v712 = vld [vmem:[%s430 + $0xa9] sm:$0xff]
      %v713 = vld [vmem:[%s430 + $0xb1] sm:$0xff]
      %v714 = vld [vmem:[%s660 + $0x1] sm:$0x1]
      %v715 = vlaneseq
      %v716 = vshrl.u32 %v715, 7
      %v717 = vsub.s32 0, %v716
      %v718 = vrot.slane %v714, %v717
      %v719 = vmul.f32 %v698, %v718
      %v720 = vmul.f32 %v699, %v718
      %v721 = vmul.f32 %v700, %v718
      %v722 = vmul.f32 %v701, %v718
      %v723 = vmul.f32 %v702, %v718
      %v724 = vmul.f32 %v703, %v718
      %v725 = vmul.f32 %v704, %v718
      %v726 = vmul.f32 %v705, %v718
      %v727 = vmul.f32 %v706, %v718
      %v728 = vmul.f32 %v707, %v718
      %v729 = vmul.f32 %v708, %v718
      %v730 = vmul.f32 %v709, %v718
      %v731 = vmul.f32 %v710, %v718
      %v732 = vmul.f32 %v711, %v718
      %v733 = vmul.f32 %v712, %v718
      %v734 = vmul.f32 %v713, %v718
      %v735 = vadd.f32 %v682, %v719
      %v736 = vadd.f32 %v683, %v720
      %v737 = vadd.f32 %v684, %v721
      %v738 = vadd.f32 %v685, %v722
      %v739 = vadd.f32 %v686, %v723
      %v740 = vadd.f32 %v687, %v724
      %v741 = vadd.f32 %v688, %v725
      %v742 = vadd.f32 %v689, %v726
      %v743 = vadd.f32 %v690, %v727
      %v744 = vadd.f32 %v691, %v728
      %v745 = vadd.f32 %v692, %v729
      %v746 = vadd.f32 %v693, %v730
      %v747 = vadd.f32 %v694, %v731
      %v748 = vadd.f32 %v695, %v732
      %v749 = vadd.f32 %v696, %v733
      %v750 = vadd.f32 %v697, %v734
      %v751 = vld [vmem:[%s430 + $0x2] sm:$0xff]
      %v752 = vld [vmem:[%s430 + $0xa] sm:$0xff]
      %v753 = vld [vmem:[%s430 + $0x1a] sm:$0xff]
      %v754 = vld [vmem:[%s430 + $0x22] sm:$0xff]
      %v755 = vld [vmem:[%s430 + $0x32] sm:$0xff]
      %v756 = vld [vmem:[%s430 + $0x3a] sm:$0xff]
      %v757 = vld [vmem:[%s430 + $0x4a] sm:$0xff]
      %v758 = vld [vmem:[%s430 + $0x52] sm:$0xff]
      %v759 = vld [vmem:[%s430 + $0x62] sm:$0xff]
      %v760 = vld [vmem:[%s430 + $0x6a] sm:$0xff]
      %v761 = vld [vmem:[%s430 + $0x7a] sm:$0xff]
      %v762 = vld [vmem:[%s430 + $0x82] sm:$0xff]
      %v763 = vld [vmem:[%s430 + $0x92] sm:$0xff]
      %v764 = vld [vmem:[%s430 + $0x9a] sm:$0xff]
      %v765 = vld [vmem:[%s430 + $0xaa] sm:$0xff]
      %v766 = vld [vmem:[%s430 + $0xb2] sm:$0xff]
      %v767 = vld [vmem:[%s660 + $0x2] sm:$0x1]
      %v768 = vlaneseq
      %v769 = vshrl.u32 %v768, 7
      %v770 = vsub.s32 0, %v769
      %v771 = vrot.slane %v767, %v770
      %v772 = vmul.f32 %v751, %v771
      %v773 = vmul.f32 %v752, %v771
      %v774 = vmul.f32 %v753, %v771
      %v775 = vmul.f32 %v754, %v771
      %v776 = vmul.f32 %v755, %v771
      %v777 = vmul.f32 %v756, %v771
      %v778 = vmul.f32 %v757, %v771
      %v779 = vmul.f32 %v758, %v771
      %v780 = vmul.f32 %v759, %v771
      %v781 = vmul.f32 %v760, %v771
      %v782 = vmul.f32 %v761, %v771
      %v783 = vmul.f32 %v762, %v771
      %v784 = vmul.f32 %v763, %v771
      %v785 = vmul.f32 %v764, %v771
      %v786 = vmul.f32 %v765, %v771
      %v787 = vmul.f32 %v766, %v771
      %v788 = vadd.f32 %v735, %v772
      %v789 = vadd.f32 %v736, %v773
      %v790 = vadd.f32 %v737, %v774
      %v791 = vadd.f32 %v738, %v775
      %v792 = vadd.f32 %v739, %v776
      %v793 = vadd.f32 %v740, %v777
      %v794 = vadd.f32 %v741, %v778
      %v795 = vadd.f32 %v742, %v779
      %v796 = vadd.f32 %v743, %v780
      %v797 = vadd.f32 %v744, %v781
      %v798 = vadd.f32 %v745, %v782
      %v799 = vadd.f32 %v746, %v783
      %v800 = vadd.f32 %v747, %v784
      %v801 = vadd.f32 %v748, %v785
      %v802 = vadd.f32 %v749, %v786
      %v803 = vadd.f32 %v750, %v787
      %s804 = scalar_lea.vmem [#allocation2], 48
      %v805 = vld [vmem:[%s804] sm:$0xff]
      %v806 = vld [vmem:[%s804 + $0x8] sm:$0xff]
      %v807 = vld [vmem:[%s804 + $0x18] sm:$0xff]
      %v808 = vld [vmem:[%s804 + $0x20] sm:$0xff]
      %v809 = vld [vmem:[%s804 + $0x30] sm:$0xff]
      %v810 = vld [vmem:[%s804 + $0x38] sm:$0xff]
      %v811 = vld [vmem:[%s804 + $0x48] sm:$0xff]
      %v812 = vld [vmem:[%s804 + $0x50] sm:$0xff]
      %v813 = vld [vmem:[%s804 + $0x60] sm:$0xff]
      %v814 = vld [vmem:[%s804 + $0x68] sm:$0xff]
      %v815 = vld [vmem:[%s804 + $0x78] sm:$0xff]
      %v816 = vld [vmem:[%s804 + $0x80] sm:$0xff]
      %v817 = vld [vmem:[%s804 + $0x90] sm:$0xff]
      %v818 = vld [vmem:[%s804 + $0x98] sm:$0xff]
      %v819 = vld [vmem:[%s804 + $0xa8] sm:$0xff]
      %v820 = vld [vmem:[%s804 + $0xb0] sm:$0xff]
      %s821 = scalar_lea.vmem %s3, 8
      %v822 = vld [vmem:[%s821] sm:$0x1]
      %v823 = vlaneseq
      %v824 = vshrl.u32 %v823, 7
      %v825 = vsub.s32 0, %v824
      %v826 = vrot.slane %v822, %v825
      %v827 = vmul.f32 %v805, %v826
      %v828 = vmul.f32 %v806, %v826
      %v829 = vmul.f32 %v807, %v826
      %v830 = vmul.f32 %v808, %v826
      %v831 = vmul.f32 %v809, %v826
      %v832 = vmul.f32 %v810, %v826
      %v833 = vmul.f32 %v811, %v826
      %v834 = vmul.f32 %v812, %v826
      %v835 = vmul.f32 %v813, %v826
      %v836 = vmul.f32 %v814, %v826
      %v837 = vmul.f32 %v815, %v826
      %v838 = vmul.f32 %v816, %v826
      %v839 = vmul.f32 %v817, %v826
      %v840 = vmul.f32 %v818, %v826
      %v841 = vmul.f32 %v819, %v826
      %v842 = vmul.f32 %v820, %v826
      %v843 = vadd.f32 %v788, %v827
      %v844 = vadd.f32 %v789, %v828
      %v845 = vadd.f32 %v790, %v829
      %v846 = vadd.f32 %v791, %v830
      %v847 = vadd.f32 %v792, %v831
      %v848 = vadd.f32 %v793, %v832
      %v849 = vadd.f32 %v794, %v833
      %v850 = vadd.f32 %v795, %v834
      %v851 = vadd.f32 %v796, %v835
      %v852 = vadd.f32 %v797, %v836
      %v853 = vadd.f32 %v798, %v837
      %v854 = vadd.f32 %v799, %v838
      %v855 = vadd.f32 %v800, %v839
      %v856 = vadd.f32 %v801, %v840
      %v857 = vadd.f32 %v802, %v841
      %v858 = vadd.f32 %v803, %v842
      %v859 = vld [vmem:[%s804 + $0x1] sm:$0xff]
      %v860 = vld [vmem:[%s804 + $0x9] sm:$0xff]
      %v861 = vld [vmem:[%s804 + $0x19] sm:$0xff]
      %v862 = vld [vmem:[%s804 + $0x21] sm:$0xff]
      %v863 = vld [vmem:[%s804 + $0x31] sm:$0xff]
      %v864 = vld [vmem:[%s804 + $0x39] sm:$0xff]
      %v865 = vld [vmem:[%s804 + $0x49] sm:$0xff]
      %v866 = vld [vmem:[%s804 + $0x51] sm:$0xff]
      %v867 = vld [vmem:[%s804 + $0x61] sm:$0xff]
      %v868 = vld [vmem:[%s804 + $0x69] sm:$0xff]
      %v869 = vld [vmem:[%s804 + $0x79] sm:$0xff]
      %v870 = vld [vmem:[%s804 + $0x81] sm:$0xff]
      %v871 = vld [vmem:[%s804 + $0x91] sm:$0xff]
      %v872 = vld [vmem:[%s804 + $0x99] sm:$0xff]
      %v873 = vld [vmem:[%s804 + $0xa9] sm:$0xff]
      %v874 = vld [vmem:[%s804 + $0xb1] sm:$0xff]
      %v875 = vld [vmem:[%s821 + $0x1] sm:$0x1]
      %v876 = vlaneseq
      %v877 = vshrl.u32 %v876, 7
      %v878 = vsub.s32 0, %v877
      %v879 = vrot.slane %v875, %v878
      %v880 = vmul.f32 %v859, %v879
      %v881 = vmul.f32 %v860, %v879
      %v882 = vmul.f32 %v861, %v879
      %v883 = vmul.f32 %v862, %v879
      %v884 = vmul.f32 %v863, %v879
      %v885 = vmul.f32 %v864, %v879
      %v886 = vmul.f32 %v865, %v879
      %v887 = vmul.f32 %v866, %v879
      %v888 = vmul.f32 %v867, %v879
      %v889 = vmul.f32 %v868, %v879
      %v890 = vmul.f32 %v869, %v879
      %v891 = vmul.f32 %v870, %v879
      %v892 = vmul.f32 %v871, %v879
      %v893 = vmul.f32 %v872, %v879
      %v894 = vmul.f32 %v873, %v879
      %v895 = vmul.f32 %v874, %v879
      %v896 = vadd.f32 %v843, %v880
      %v897 = vadd.f32 %v844, %v881
      %v898 = vadd.f32 %v845, %v882
      %v899 = vadd.f32 %v846, %v883
      %v900 = vadd.f32 %v847, %v884
      %v901 = vadd.f32 %v848, %v885
      %v902 = vadd.f32 %v849, %v886
      %v903 = vadd.f32 %v850, %v887
      %v904 = vadd.f32 %v851, %v888
      %v905 = vadd.f32 %v852, %v889
      %v906 = vadd.f32 %v853, %v890
      %v907 = vadd.f32 %v854, %v891
      %v908 = vadd.f32 %v855, %v892
      %v909 = vadd.f32 %v856, %v893
      %v910 = vadd.f32 %v857, %v894
      %v911 = vadd.f32 %v858, %v895
      %v912 = vld [vmem:[%s804 + $0x2] sm:$0xff]
      %v913 = vld [vmem:[%s804 + $0xa] sm:$0xff]
      %v914 = vld [vmem:[%s804 + $0x1a] sm:$0xff]
      %v915 = vld [vmem:[%s804 + $0x22] sm:$0xff]
      %v916 = vld [vmem:[%s804 + $0x32] sm:$0xff]
      %v917 = vld [vmem:[%s804 + $0x3a] sm:$0xff]
      %v918 = vld [vmem:[%s804 + $0x4a] sm:$0xff]
      %v919 = vld [vmem:[%s804 + $0x52] sm:$0xff]
      %v920 = vld [vmem:[%s804 + $0x62] sm:$0xff]
      %v921 = vld [vmem:[%s804 + $0x6a] sm:$0xff]
      %v922 = vld [vmem:[%s804 + $0x7a] sm:$0xff]
      %v923 = vld [vmem:[%s804 + $0x82] sm:$0xff]
      %v924 = vld [vmem:[%s804 + $0x92] sm:$0xff]
      %v925 = vld [vmem:[%s804 + $0x9a] sm:$0xff]
      %v926 = vld [vmem:[%s804 + $0xaa] sm:$0xff]
      %v927 = vld [vmem:[%s804 + $0xb2] sm:$0xff]
      %v928 = vld [vmem:[%s821 + $0x2] sm:$0x1]
      %v929 = vlaneseq
      %v930 = vshrl.u32 %v929, 7
      %v931 = vsub.s32 0, %v930
      %v932 = vrot.slane %v928, %v931
      %v933 = vmul.f32 %v912, %v932
      %v934 = vmul.f32 %v913, %v932
      %v935 = vmul.f32 %v914, %v932
      %v936 = vmul.f32 %v915, %v932
      %v937 = vmul.f32 %v916, %v932
      %v938 = vmul.f32 %v917, %v932
      %v939 = vmul.f32 %v918, %v932
      %v940 = vmul.f32 %v919, %v932
      %v941 = vmul.f32 %v920, %v932
      %v942 = vmul.f32 %v921, %v932
      %v943 = vmul.f32 %v922, %v932
      %v944 = vmul.f32 %v923, %v932
      %v945 = vmul.f32 %v924, %v932
      %v946 = vmul.f32 %v925, %v932
      %v947 = vmul.f32 %v926, %v932
      %v948 = vmul.f32 %v927, %v932
      %v949 = vadd.f32 %v896, %v933
      %v950 = vadd.f32 %v897, %v934
      %v951 = vadd.f32 %v898, %v935
      %v952 = vadd.f32 %v899, %v936
      %v953 = vadd.f32 %v900, %v937
      %v954 = vadd.f32 %v901, %v938
      %v955 = vadd.f32 %v902, %v939
      %v956 = vadd.f32 %v903, %v940
      %v957 = vadd.f32 %v904, %v941
      %v958 = vadd.f32 %v905, %v942
      %v959 = vadd.f32 %v906, %v943
      %v960 = vadd.f32 %v907, %v944
      %v961 = vadd.f32 %v908, %v945
      %v962 = vadd.f32 %v909, %v946
      %v963 = vadd.f32 %v910, %v947
      %v964 = vadd.f32 %v911, %v948
      %965 = vst.msk [vmem:[%s391] sm:$0xff] %vm431, %v949
      %966 = vst.msk [vmem:[%s391 + $0x8] sm:$0xff] %vm431, %v950
      %967 = vst.msk [vmem:[%s391 + $0x10] sm:$0xff] %vm431, %v951
      %968 = vst.msk [vmem:[%s391 + $0x18] sm:$0xff] %vm431, %v952
      %969 = vst.msk [vmem:[%s391 + $0x20] sm:$0xff] %vm431, %v953
      %970 = vst.msk [vmem:[%s391 + $0x28] sm:$0xff] %vm431, %v954
      %971 = vst.msk [vmem:[%s391 + $0x30] sm:$0xff] %vm431, %v955
      %972 = vst.msk [vmem:[%s391 + $0x38] sm:$0xff] %vm431, %v956
      %973 = vst.msk [vmem:[%s391 + $0x40] sm:$0xff] %vm431, %v957
      %974 = vst.msk [vmem:[%s391 + $0x48] sm:$0xff] %vm431, %v958
      %975 = vst.msk [vmem:[%s391 + $0x50] sm:$0xff] %vm431, %v959
      %976 = vst.msk [vmem:[%s391 + $0x58] sm:$0xff] %vm431, %v960
      %977 = vst.msk [vmem:[%s391 + $0x60] sm:$0xff] %vm431, %v961
      %978 = vst.msk [vmem:[%s391 + $0x68] sm:$0xff] %vm431, %v962
      %979 = vst.msk [vmem:[%s391 + $0x70] sm:$0xff] %vm431, %v963
      %980 = vst.msk [vmem:[%s391 + $0x78] sm:$0xff] %vm431, %v964
      %s981 = smul.u32 8, %s21
      %p982 = scmp.lt.s32.totalorder %s20, 1
      %s983 = scalar_select %p982, %s20, 1
      %p984 = scmp.lt.s32.totalorder %s981, 15
      %s985 = scalar_select %p984, %s981, 15
      %s986 = smul.addr %s985, 2
      %s987 = smul.addr %s983, 32
      %s988 = sadd.s32 %s986, %s987
      %s989 = smul.addr %s988, 8
      %s990 = scalar_lea.vmem %s5, %s989
      // Predicated region
      $region57: #{shiftmlp_forward.4} parent=39 // pred_check
        %p991 = pneg %p190
      $region58: #{shiftmlp_forward.4} parent=39 // pred_check_branch
        %993 = sbr.rel (%p991) target = $region60
      $region59: #{shiftmlp_forward.4} parent=39 // pred_region
        %s994 = smul.u32 8, %s21
      $region60: #{shiftmlp_forward.4} parent=39 // pred_fallthru
        _
    $region40: #{shiftmlp_forward.4} parent=5 // pred_fallthru
      _
    %p995 = scmp.le.s32.totalorder 2, %s11
    // Predicated region
    $region61: #{shiftmlp_forward.4} parent=5 // pred_check
      %p996 = pneg %p995
    $region62: #{shiftmlp_forward.4} parent=5 // pred_check_branch
      %998 = sbr.rel (%p996) target = $region64
    $region63: #{shiftmlp_forward.4} parent=5 // pred_region
      %s999 = ssub.s32 %s11, 2
      // Predicated region
      $region65: #{shiftmlp_forward.4} parent=63 // pred_check
        %p1000 = pneg %p196
      $region66: #{shiftmlp_forward.4} parent=63 // pred_check_branch
        %1002 = sbr.rel (%p1000) target = $region68
      $region67: #{shiftmlp_forward.4} parent=63 // pred_region
        %s1003 = smul.u32 8, %s23
        %p1004 = scmp.lt.s32.totalorder %s22, 1
        %s1005 = scalar_select %p1004, %s22, 1
        %p1006 = scmp.lt.s32.totalorder %s1003, 15
        %s1007 = scalar_select %p1006, %s1003, 15
        %s1008 = smul.addr %s1007, 2
        %s1009 = smul.addr %s1005, 32
        %s1010 = sadd.s32 %s1008, %s1009
        %s1011 = smul.addr %s1010, 8
        %s1012 = scalar_lea.vmem %s5, %s1011
      $region68: #{shiftmlp_forward.4} parent=63 // pred_fallthru
        _
    $region64: #{shiftmlp_forward.4} parent=5 // pred_fallthru
      _
  $region6: #{shiftmlp_forward.4} parent=0 // loop_footer
    %s15 = sadd.s32 1, %s11
  $region7: #{shiftmlp_forward.4} parent=0 // loop_footer_branch
    %10 = sbr.rel target = $region3
  $region8: #{shiftmlp_forward.4} parent=0 // loop_exit
    _

</llo_original>
